<compile_context>
chip_gen: v7x
topology: tpu7x:2x2x1
jax: 0.10.0
libtpu: 0.0.40
codegen_flags: <defaults>
</compile_context>

<pallas_src>
import functools

import jax
import jax.numpy as jnp
from jax import lax
from jax.experimental import pallas as pl
from jax.experimental.pallas import tpu as pltpu


# ----------------------------------------------------------------------------
# Tiled linear (y = x @ W + b) -- used for qkv_proj and out_proj.
# x: bf16, W pre-transposed to (Cin, Cout) bf16, b: f32.  f32 accumulate.
# ----------------------------------------------------------------------------
def _linear_kernel(x_ref, w_ref, b_ref, o_ref, acc_ref):
    @pl.when(pl.program_id(2) == 0)
    def _init():
        acc_ref[...] = jnp.zeros_like(acc_ref)

    # bf16 MXU operands straight from the refs -- no per-step casts.
    acc_ref[...] += jnp.dot(x_ref[...], w_ref[...],
                            preferred_element_type=jnp.float32)

    @pl.when(pl.program_id(2) == pl.num_programs(2) - 1)
    def _finalize():
        o_ref[...] = (acc_ref[...] + b_ref[...]).astype(o_ref.dtype)


def _round_up(x, m):
    return ((x + m - 1) // m) * m


def _tile_and_pad(dim, pref, align):
    """Returns (tile, padded_dim).  Full dim for small dims (legal block),
    else the largest `align`-aligned divisor <= pref (no padding), else pad the
    dim up to a multiple of pref."""
    if dim <= pref:
        return dim, dim
    for t in range(pref - pref % align, align - 1, -align):
        if dim % t == 0:
            return t, dim
    return pref, _round_up(dim, pref)


def pallas_linear(x2d, w_t, b, out_dtype=jnp.float32):
    """x2d: (M, K) bf16; w_t: (K, N) bf16 (pre-transposed); b: (N,) f32."""
    M, K = x2d.shape
    Kw, N = w_t.shape
    assert K == Kw
    tm, Mp = _tile_and_pad(M, 512, 8)      # sublane-aligned
    tk, Kp = _tile_and_pad(K, 512, 128)    # lane-aligned
    tn, Np = _tile_and_pad(N, 512, 128)    # lane-aligned

    if (Mp, Kp) != (M, K):
        x2d = jnp.pad(x2d, ((0, Mp - M), (0, Kp - K)))
    if (Kp, Np) != (K, N):
        w_t = jnp.pad(w_t, ((0, Kp - K), (0, Np - N)))
    b2 = b.reshape(1, N)
    if Np != N:
        b2 = jnp.pad(b2, ((0, 0), (0, Np - N)))

    grid = (Mp // tm, Np // tn, Kp // tk)
    out = pl.pallas_call(
        _linear_kernel,
        out_shape=jax.ShapeDtypeStruct((Mp, Np), out_dtype),
        grid=grid,
        in_specs=[
            pl.BlockSpec((tm, tk), lambda i, j, k: (i, k)),
            pl.BlockSpec((tk, tn), lambda i, j, k: (k, j)),
            pl.BlockSpec((1, tn), lambda i, j, k: (0, j)),
        ],
        out_specs=pl.BlockSpec((tm, tn), lambda i, j, k: (i, j)),
        scratch_shapes=[pltpu.VMEM((tm, tn), jnp.float32)],
        compiler_params=pltpu.CompilerParams(
            dimension_semantics=("parallel", "parallel", "arbitrary"),
            vmem_limit_bytes=32 * 1024 * 1024),
    )(x2d, w_t, b2)
    if (Mp, Np) != (M, N):
        out = out[:M, :N]
    return out


# ----------------------------------------------------------------------------
# RoPE tables, pre-expanded to the fused (L, C) lane layout.
#   cos_full[:, l]    = cos(pos * inv_freq[l mod (D/2)])
#   sin_signed[:, l]  = -/+ sin(...)  (negative on the first quarter of each
#                        half -- the rotate_half sign folded into the table)
# Built ONCE outside jit and passed in like the weights.
# ----------------------------------------------------------------------------
def rope_tables_fused(L, num_heads, head_dim):
    half = head_dim // 2
    quarter = head_dim // 4
    inv_freq = 1.0 / 10000 ** (
        jnp.arange(0, head_dim, 2, dtype=jnp.float32) / head_dim)
    pos = jnp.arange(L, dtype=jnp.float32)
    sinusoid = pos[:, None] * inv_freq[None, :]          # (L, half)
    cos = jnp.cos(sinusoid)
    sin = jnp.sin(sinusoid)
    reps = 2 * num_heads                                 # two halves per head
    cos_full = jnp.tile(cos, (1, reps))                  # (L, C)
    sin_full = jnp.tile(sin, (1, reps))                  # (L, C)
    lane_in_half = jnp.arange(num_heads * head_dim) % half
    sign = jnp.where(lane_in_half < quarter, -1.0, 1.0)[None, :]
    return cos_full, sin_full * sign                     # f32 (RoPE acc in f32)


# ----------------------------------------------------------------------------
# Attention kernel.  Grid (B, L/tq): one batch element x one q-row tile per
# step, all heads fused on the lane axis.  k/v rows (full L) stay resident in
# VMEM across the q-tile axis (block index constant in qi -> no re-DMA).
# ----------------------------------------------------------------------------
def _attn_kernel(qkv_q_ref, qkv_kv_ref, cosq_ref, sinq_ref, cosk_ref, sink_ref,
                 o_ref, *, num_heads):
    C3 = qkv_q_ref.shape[2]
    C = C3 // 3
    H = num_heads
    D = C // H
    half = D // 2
    quarter = D // 4
    scale = 1.0 / (D ** 0.5)

    def rope(t, cos, sin_signed):
        # Per-head rotate-half on the fused (rows, C) layout:
        #   out[l] = t[l]*cos[l] + (t[l+q] if l%half<q else t[l-q]) * sin_signed[l]
        if C % 128 == 0:
            # lane-aligned: XLU roll (free slot), result[j] = t[(j - shift) % C]
            r_plus = pltpu.roll(t, C - quarter, axis=-1)   # t[:, j + quarter]
            r_minus = pltpu.roll(t, quarter, axis=-1)      # t[:, j - quarter]
        else:
            # small / unaligned C: static-slice rotation
            r_plus = jnp.concatenate([t[:, quarter:], t[:, :quarter]], axis=-1)
            r_minus = jnp.concatenate([t[:, C - quarter:], t[:, :C - quarter]],
                                      axis=-1)
        lane = lax.broadcasted_iota(jnp.int32, t.shape, 1)
        rolled = jnp.where((lane % half) < quarter, r_plus, r_minus)
        # bf16 t x f32 tables -> f32 math (RoPE accumulate stays f32).
        return t * cos + rolled * sin_signed

    # q/k straight from the refs (static slices; no f32 slab materialized).
    q = (rope(qkv_q_ref[0, :, :C], cosq_ref[...], sinq_ref[...]) * scale
         ).astype(jnp.bfloat16)                                  # (tq, C)
    k = rope(qkv_kv_ref[0, :, C:2 * C], cosk_ref[...], sink_ref[...]
             ).astype(jnp.bfloat16)                              # (L, C)

    # TODO(synk): on v6e/v7x a bf16 exp (s - m <= 0) would halve the EUP cost
    #             when D is small; kept f32 here for accuracy/portability (v5e).
    for h in range(H):                                           # small, static
        sl = slice(h * D, (h + 1) * D)
        # scores = q_h @ k_h^T with no explicit transpose (contract last dims).
        s = lax.dot_general(q[:, sl], k[:, sl], (((1,), (1,)), ((), ())),
                            preferred_element_type=jnp.float32)  # (tq, L)
        m = jnp.max(s, axis=-1, keepdims=True)
        p = jnp.exp(s - m)
        inv = pl.reciprocal(jnp.sum(p, axis=-1, keepdims=True), approx=True)
        w = (p * inv).astype(jnp.bfloat16)
        # v taken straight from the ref as bf16 (no f32 round trip).
        v_h = qkv_kv_ref[0, :, 2 * C + h * D: 2 * C + (h + 1) * D]  # (L, D)
        # Write this head's result directly into its lane window (no concat).
        o_ref[0, :, sl] = jnp.dot(w, v_h,
                                  preferred_element_type=jnp.float32
                                  ).astype(o_ref.dtype)


def _q_tile(L, pref=256):
    if L <= pref:
        return L
    for t in range(pref - pref % 8, 7, -8):   # largest 8-aligned divisor
        if L % t == 0:
            return t
    return L                                   # rare fallback: single tile


def pallas_attention(qkv, cos_full, sin_signed, *, num_heads):
    """qkv: (B, L, 3C) bf16; tables: (L, C) f32.  Returns (B, L, C) bf16."""
    B, L, C3 = qkv.shape
    C = C3 // 3
    tq = _q_tile(L)
    kernel = functools.partial(_attn_kernel, num_heads=num_heads)
    return pl.pallas_call(
        kernel,
        out_shape=jax.ShapeDtypeStruct((B, L, C), jnp.bfloat16),
        grid=(B, L // tq),
        in_specs=[
            pl.BlockSpec((1, tq, C3), lambda b, qi: (b, qi, 0)),  # q rows
            pl.BlockSpec((1, L, C3), lambda b, qi: (b, 0, 0)),    # k/v rows
            pl.BlockSpec((tq, C), lambda b, qi: (qi, 0)),         # cos (q rows)
            pl.BlockSpec((tq, C), lambda b, qi: (qi, 0)),         # sin (q rows)
            pl.BlockSpec((L, C), lambda b, qi: (0, 0)),           # cos (k rows)
            pl.BlockSpec((L, C), lambda b, qi: (0, 0)),           # sin (k rows)
        ],
        out_specs=pl.BlockSpec((1, tq, C), lambda b, qi: (b, qi, 0)),
        compiler_params=pltpu.CompilerParams(
            dimension_semantics=("parallel", "parallel"),
            vmem_limit_bytes=64 * 1024 * 1024),
    )(qkv, qkv, cos_full, sin_signed, cos_full, sin_signed)


# ----------------------------------------------------------------------------
# Full forward pass.  Weights arrive pre-transposed (Cin, Cout) and pre-cast to
# bf16; RoPE tables arrive precomputed (both done once, outside jit).
# ----------------------------------------------------------------------------
@functools.partial(jax.jit, static_argnames=("num_heads",))
def mhsa_forward(x, w_qkv_t, b_qkv, w_out_t, b_out, cos_full, sin_signed,
                 num_heads):
    B, L, C = x.shape
    H = num_heads
    assert C % H == 0
    D = C // H
    assert D % 4 == 0, "RoPE rotate-half needs head_dim % 4 == 0"

    # Cast x to bf16 once (all MXU operands bf16, f32 accumulate in-kernel).
    x_bf16 = x.astype(jnp.bfloat16)

    # qkv projection -> bf16 activation (halves HBM writeback + re-read).
    qkv = pallas_linear(x_bf16.reshape(B * L, C), w_qkv_t, b_qkv,
                        out_dtype=jnp.bfloat16).reshape(B, L, 3 * C)

    # RoPE + attention, heads fused, q/k/v taken straight from the qkv slab.
    attn = pallas_attention(qkv, cos_full, sin_signed, num_heads=H)  # bf16

    # out projection (f32 output, matching the fp32 PyTorch module).
    out = pallas_linear(attn.reshape(B * L, C), w_out_t, b_out,
                        out_dtype=jnp.float32).reshape(B, L, C)
    return out


# ----------------------------------------------------------------------------
# Pure-JAX f32 reference mirroring the PyTorch module exactly (eval mode).
# ----------------------------------------------------------------------------
def _ref_rope_tables(L, D):
    inv_freq = 1.0 / 10000 ** (jnp.arange(0, D, 2, dtype=jnp.float32) / D)
    pos = jnp.arange(L, dtype=jnp.float32)
    sinusoid = jnp.einsum("i,j->ij", pos, inv_freq)  # (L, D//2)
    return jnp.cos(sinusoid), jnp.sin(sinusoid)


def ref_forward(x, w_qkv, b_qkv, w_out, b_out, num_heads):
    B, L, C = x.shape
    H = num_heads
    D = C // H
    qkv = x @ w_qkv.T + b_qkv
    q, k, v = jnp.split(qkv, 3, axis=-1)
    q = q.reshape(B, L, H, D)
    k = k.reshape(B, L, H, D)
    v = v.reshape(B, L, H, D)

    cos, sin = _ref_rope_tables(L, D)
    cos = cos[None, :, None, :]
    sin = sin[None, :, None, :]

    def rot_half(t):
        t1, t2 = jnp.split(t, 2, axis=-1)
        return jnp.concatenate([-t2, t1], axis=-1)

    def app(t):
        return t * cos + rot_half(t) * sin

    q = jnp.concatenate([app(q[..., : D // 2]), app(q[..., D // 2:])], axis=-1)
    k = jnp.concatenate([app(k[..., : D // 2]), app(k[..., D // 2:])], axis=-1)

    q = q.transpose(0, 2, 1, 3)
    k = k.transpose(0, 2, 1, 3)
    v = v.transpose(0, 2, 1, 3)
    scores = (q @ jnp.swapaxes(k, -1, -2)) / (D ** 0.5)
    w = jax.nn.softmax(scores, axis=-1)
    out = (w @ v).transpose(0, 2, 1, 3).reshape(B, L, C)
    return out @ w_out.T + b_out


if __name__ == "__main__":
    B, L = 2, 16
    emb_size, num_heads = 32, 4
    head_dim = emb_size // num_heads

    key = jax.random.PRNGKey(0)
    kx, k1, k2, k3, k4 = jax.random.split(key, 5)
    x = jax.random.normal(kx, (B, L, emb_size), dtype=jnp.float32)

    bound = 1.0 / (emb_size ** 0.5)
    w_qkv = jax.random.uniform(k1, (3 * emb_size, emb_size), jnp.float32, -bound, bound)
    b_qkv = jax.random.uniform(k2, (3 * emb_size,), jnp.float32, -bound, bound)
    w_out = jax.random.uniform(k3, (emb_size, emb_size), jnp.float32, -bound, bound)
    b_out = jax.random.uniform(k4, (emb_size,), jnp.float32, -bound, bound)

    # Pre-transpose + pre-cast MXU weights and build RoPE tables ONCE, outside jit.
    w_qkv_t = jnp.asarray(w_qkv.T, dtype=jnp.bfloat16)
    w_out_t = jnp.asarray(w_out.T, dtype=jnp.bfloat16)
    cos_full, sin_signed = rope_tables_fused(L, num_heads, head_dim)

    out = mhsa_forward(x, w_qkv_t, b_qkv, w_out_t, b_out, cos_full, sin_signed,
                       num_heads=num_heads)
    out = jax.block_until_ready(out)

    ref = ref_forward(x, w_qkv, b_qkv, w_out, b_out, num_heads)
    assert out.shape == (B, L, emb_size)
    max_err = float(jnp.max(jnp.abs(out - ref)))
    # bf16 MXU operands / bf16 qkv activation (f32 accumulate) -> relaxed tol.
    assert jnp.allclose(out, ref, atol=5e-2, rtol=5e-2), max_err
    print("KERNEL_OK")
</pallas_src>

<mosaic_0001>
module attributes {stable_mosaic.version = 11 : i64} {
  func.func @_linear_kernel(%arg0: i32, %arg1: i32, %arg2: i32, %arg3: memref<32x32xbf16, #tpu.memory_space<vmem>>, %arg4: memref<32x32xbf16, #tpu.memory_space<vmem>>, %arg5: memref<1x32xf32, #tpu.memory_space<vmem>>, %arg6: memref<32x32xf32, #tpu.memory_space<vmem>>, %arg7: memref<32x32xf32, #tpu.memory_space<vmem>>) attributes {dimension_semantics = [#tpu.dimension_semantics<parallel>, #tpu.dimension_semantics<parallel>, #tpu.dimension_semantics<arbitrary>], iteration_bounds = array<i64: 1, 1, 1>, scalar_prefetch = 0 : i64, scratch_operands = 1 : i64, tpu.core_type = #tpu.core_type<tc>, window_params = [{transform_indices = @transform_0, window_bounds = array<i64: 32, 32>}, {transform_indices = @transform_1, window_bounds = array<i64: 32, 32>}, {transform_indices = @transform_2, window_bounds = array<i64: 1, 32>}, {transform_indices = @transform_3, window_bounds = array<i64: 32, 32>}]} {
    %c0_i32 = arith.constant 0 : i32
    %0 = arith.cmpi eq, %arg2, %c0_i32 : i32
    %1 = arith.extui %0 : i1 to i32
    %c0_i32_0 = arith.constant 0 : i32
    %2 = arith.cmpi ne, %1, %c0_i32_0 : i32
    scf.if %2 {
      %cst_10 = arith.constant 0.000000e+00 : f32
      %12 = vector.broadcast %cst_10 : f32 to vector<32x32xf32>
      %c0_11 = arith.constant 0 : index
      %c0_12 = arith.constant 0 : index
      %13 = vector.load %arg7[%c0_11, %c0_12] : memref<32x32xf32, #tpu.memory_space<vmem>>, vector<32x32xf32>
      tpu.vector_store %arg7[%c0_11, %c0_12], %12 {strides = array<i32>} : memref<32x32xf32, #tpu.memory_space<vmem>>, vector<32x32xf32>,
    } else {
    }
    %c0 = arith.constant 0 : index
    %c0_1 = arith.constant 0 : index
    %3 = vector.load %arg7[%c0, %c0_1] : memref<32x32xf32, #tpu.memory_space<vmem>>, vector<32x32xf32>
    %c0_2 = arith.constant 0 : index
    %c0_3 = arith.constant 0 : index
    %4 = vector.load %arg3[%c0_2, %c0_3] : memref<32x32xbf16, #tpu.memory_space<vmem>>, vector<32x32xbf16>
    %c0_4 = arith.constant 0 : index
    %c0_5 = arith.constant 0 : index
    %5 = vector.load %arg4[%c0_4, %c0_5] : memref<32x32xbf16, #tpu.memory_space<vmem>>, vector<32x32xbf16>
    %cst = arith.constant dense<0.000000e+00> : vector<32x32xf32>
    %6 = tpu.matmul %4, %5, %cst {dimension_numbers = #tpu.dot_dimension_numbers<[1], [0], [0], [1], [0, 0, 1, 1], [], []>} : vector<32x32xbf16>, vector<32x32xbf16>, vector<32x32xf32> -> vector<32x32xf32>
    %7 = arith.addf %3, %6 : vector<32x32xf32>
    %c0_6 = arith.constant 0 : index
    %c0_7 = arith.constant 0 : index
    %8 = vector.load %arg7[%c0_6, %c0_7] : memref<32x32xf32, #tpu.memory_space<vmem>>, vector<32x32xf32>
    tpu.vector_store %arg7[%c0_6, %c0_7], %7 {strides = array<i32>} : memref<32x32xf32, #tpu.memory_space<vmem>>, vector<32x32xf32>,
    %c0_i32_8 = arith.constant 0 : i32
    %9 = arith.cmpi eq, %arg2, %c0_i32_8 : i32
    %10 = arith.extui %9 : i1 to i32
    %c0_i32_9 = arith.constant 0 : i32
    %11 = arith.cmpi ne, %10, %c0_i32_9 : i32
    scf.if %11 {
      %c0_10 = arith.constant 0 : index
      %c0_11 = arith.constant 0 : index
      %12 = vector.load %arg7[%c0_10, %c0_11] : memref<32x32xf32, #tpu.memory_space<vmem>>, vector<32x32xf32>
      %c0_12 = arith.constant 0 : index
      %c0_13 = arith.constant 0 : index
      %13 = vector.load %arg5[%c0_12, %c0_13] : memref<1x32xf32, #tpu.memory_space<vmem>>, vector<1x32xf32>
      %14 = vector.broadcast %13 : vector<1x32xf32> to vector<32x32xf32>
      %15 = arith.addf %12, %14 : vector<32x32xf32>
      %c0_14 = arith.constant 0 : index
      %c0_15 = arith.constant 0 : index
      %16 = vector.load %arg6[%c0_14, %c0_15] : memref<32x32xf32, #tpu.memory_space<vmem>>, vector<32x32xf32>
      tpu.vector_store %arg6[%c0_14, %c0_15], %15 {strides = array<i32>} : memref<32x32xf32, #tpu.memory_space<vmem>>, vector<32x32xf32>,
    } else {
    }
    return
  }
  func.func @transform_0(%arg0: i32, %arg1: i32, %arg2: i32) -> (i32, i32) {
    %c0_i32 = arith.constant 0 : i32
    return %arg0, %arg2 : i32, i32
  }
  func.func @transform_1(%arg0: i32, %arg1: i32, %arg2: i32) -> (i32, i32) {
    %c0_i32 = arith.constant 0 : i32
    return %arg2, %arg1 : i32, i32
  }
  func.func @transform_2(%arg0: i32, %arg1: i32, %arg2: i32) -> (i32, i32) {
    %c0_i32 = arith.constant 0 : i32
    %c0_i32_0 = arith.constant 0 : i32
    return %c0_i32, %arg1 : i32, i32
  }
  func.func @transform_3(%arg0: i32, %arg1: i32, %arg2: i32) -> (i32, i32) {
    %c0_i32 = arith.constant 0 : i32
    return %arg0, %arg1 : i32, i32
  }
}

module attributes {stable_mosaic.version = 11 : i64} {
  func.func @_linear_kernel(%arg0: i32, %arg1: i32, %arg2: i32, %arg3: memref<32x32xbf16, #tpu.memory_space<vmem>>, %arg4: memref<32x96xbf16, #tpu.memory_space<vmem>>, %arg5: memref<1x96xf32, #tpu.memory_space<vmem>>, %arg6: memref<32x96xbf16, #tpu.memory_space<vmem>>, %arg7: memref<32x96xf32, #tpu.memory_space<vmem>>) attributes {dimension_semantics = [#tpu.dimension_semantics<parallel>, #tpu.dimension_semantics<parallel>, #tpu.dimension_semantics<arbitrary>], iteration_bounds = array<i64: 1, 1, 1>, scalar_prefetch = 0 : i64, scratch_operands = 1 : i64, tpu.core_type = #tpu.core_type<tc>, window_params = [{transform_indices = @transform_0, window_bounds = array<i64: 32, 32>}, {transform_indices = @transform_1, window_bounds = array<i64: 32, 96>}, {transform_indices = @transform_2, window_bounds = array<i64: 1, 96>}, {transform_indices = @transform_3, window_bounds = array<i64: 32, 96>}]} {
    %c0_i32 = arith.constant 0 : i32
    %0 = arith.cmpi eq, %arg2, %c0_i32 : i32
    %1 = arith.extui %0 : i1 to i32
    %c0_i32_0 = arith.constant 0 : i32
    %2 = arith.cmpi ne, %1, %c0_i32_0 : i32
    scf.if %2 {
      %cst_10 = arith.constant 0.000000e+00 : f32
      %12 = vector.broadcast %cst_10 : f32 to vector<32x96xf32>
      %c0_11 = arith.constant 0 : index
      %c0_12 = arith.constant 0 : index
      %13 = vector.load %arg7[%c0_11, %c0_12] : memref<32x96xf32, #tpu.memory_space<vmem>>, vector<32x96xf32>
      tpu.vector_store %arg7[%c0_11, %c0_12], %12 {strides = array<i32>} : memref<32x96xf32, #tpu.memory_space<vmem>>, vector<32x96xf32>,
    } else {
    }
    %c0 = arith.constant 0 : index
    %c0_1 = arith.constant 0 : index
    %3 = vector.load %arg7[%c0, %c0_1] : memref<32x96xf32, #tpu.memory_space<vmem>>, vector<32x96xf32>
    %c0_2 = arith.constant 0 : index
    %c0_3 = arith.constant 0 : index
    %4 = vector.load %arg3[%c0_2, %c0_3] : memref<32x32xbf16, #tpu.memory_space<vmem>>, vector<32x32xbf16>
    %c0_4 = arith.constant 0 : index
    %c0_5 = arith.constant 0 : index
    %5 = vector.load %arg4[%c0_4, %c0_5] : memref<32x96xbf16, #tpu.memory_space<vmem>>, vector<32x96xbf16>
    %cst = arith.constant dense<0.000000e+00> : vector<32x96xf32>
    %6 = tpu.matmul %4, %5, %cst {dimension_numbers = #tpu.dot_dimension_numbers<[1], [0], [0], [1], [0, 0, 1, 1], [], []>} : vector<32x32xbf16>, vector<32x96xbf16>, vector<32x96xf32> -> vector<32x96xf32>
    %7 = arith.addf %3, %6 : vector<32x96xf32>
    %c0_6 = arith.constant 0 : index
    %c0_7 = arith.constant 0 : index
    %8 = vector.load %arg7[%c0_6, %c0_7] : memref<32x96xf32, #tpu.memory_space<vmem>>, vector<32x96xf32>
    tpu.vector_store %arg7[%c0_6, %c0_7], %7 {strides = array<i32>} : memref<32x96xf32, #tpu.memory_space<vmem>>, vector<32x96xf32>,
    %c0_i32_8 = arith.constant 0 : i32
    %9 = arith.cmpi eq, %arg2, %c0_i32_8 : i32
    %10 = arith.extui %9 : i1 to i32
    %c0_i32_9 = arith.constant 0 : i32
    %11 = arith.cmpi ne, %10, %c0_i32_9 : i32
    scf.if %11 {
      %c0_10 = arith.constant 0 : index
      %c0_11 = arith.constant 0 : index
      %12 = vector.load %arg7[%c0_10, %c0_11] : memref<32x96xf32, #tpu.memory_space<vmem>>, vector<32x96xf32>
      %c0_12 = arith.constant 0 : index
      %c0_13 = arith.constant 0 : index
      %13 = vector.load %arg5[%c0_12, %c0_13] : memref<1x96xf32, #tpu.memory_space<vmem>>, vector<1x96xf32>
      %14 = vector.broadcast %13 : vector<1x96xf32> to vector<32x96xf32>
      %15 = arith.addf %12, %14 : vector<32x96xf32>
      %16 = arith.truncf %15 : vector<32x96xf32> to vector<32x96xbf16>
      %c0_14 = arith.constant 0 : index
      %c0_15 = arith.constant 0 : index
      %17 = vector.load %arg6[%c0_14, %c0_15] : memref<32x96xbf16, #tpu.memory_space<vmem>>, vector<32x96xbf16>
      tpu.vector_store %arg6[%c0_14, %c0_15], %16 {strides = array<i32>} : memref<32x96xbf16, #tpu.memory_space<vmem>>, vector<32x96xbf16>,
    } else {
    }
    return
  }
  func.func @transform_0(%arg0: i32, %arg1: i32, %arg2: i32) -> (i32, i32) {
    %c0_i32 = arith.constant 0 : i32
    return %arg0, %arg2 : i32, i32
  }
  func.func @transform_1(%arg0: i32, %arg1: i32, %arg2: i32) -> (i32, i32) {
    %c0_i32 = arith.constant 0 : i32
    return %arg2, %arg1 : i32, i32
  }
  func.func @transform_2(%arg0: i32, %arg1: i32, %arg2: i32) -> (i32, i32) {
    %c0_i32 = arith.constant 0 : i32
    %c0_i32_0 = arith.constant 0 : i32
    return %c0_i32, %arg1 : i32, i32
  }
  func.func @transform_3(%arg0: i32, %arg1: i32, %arg2: i32) -> (i32, i32) {
    %c0_i32 = arith.constant 0 : i32
    return %arg0, %arg1 : i32, i32
  }
}

module attributes {stable_mosaic.version = 11 : i64} {
  func.func @_attn_kernel(%arg0: i32, %arg1: i32, %arg2: memref<1x16x96xbf16, #tpu.memory_space<vmem>>, %arg3: memref<1x16x96xbf16, #tpu.memory_space<vmem>>, %arg4: memref<16x32xf32, #tpu.memory_space<vmem>>, %arg5: memref<16x32xf32, #tpu.memory_space<vmem>>, %arg6: memref<16x32xf32, #tpu.memory_space<vmem>>, %arg7: memref<16x32xf32, #tpu.memory_space<vmem>>, %arg8: memref<1x16x32xbf16, #tpu.memory_space<vmem>>) attributes {dimension_semantics = [#tpu.dimension_semantics<parallel>, #tpu.dimension_semantics<parallel>], iteration_bounds = array<i64: 2, 1>, scalar_prefetch = 0 : i64, scratch_operands = 0 : i64, tpu.core_type = #tpu.core_type<tc>, window_params = [{transform_indices = @transform_0, window_bounds = array<i64: 1, 16, 96>}, {transform_indices = @transform_1, window_bounds = array<i64: 1, 16, 96>}, {transform_indices = @transform_2, window_bounds = array<i64: 16, 32>}, {transform_indices = @transform_3, window_bounds = array<i64: 16, 32>}, {pipeline_mode = #tpu.pipeline_mode<synchronous>, transform_indices = @transform_4, window_bounds = array<i64: 16, 32>}, {pipeline_mode = #tpu.pipeline_mode<synchronous>, transform_indices = @transform_5, window_bounds = array<i64: 16, 32>}, {transform_indices = @transform_6, window_bounds = array<i64: 1, 16, 32>}]} {
    %c0 = arith.constant 0 : index
    %c0_0 = arith.constant 0 : index
    %c0_1 = arith.constant 0 : index
    %0 = vector.load %arg2[%c0, %c0_0, %c0_1] : memref<1x16x96xbf16, #tpu.memory_space<vmem>>, vector<1x16x32xbf16>
    %1 = vector.shape_cast %0 : vector<1x16x32xbf16> to vector<16x32xbf16>
    %c0_2 = arith.constant 0 : index
    %c0_3 = arith.constant 0 : index
    %2 = vector.load %arg4[%c0_2, %c0_3] : memref<16x32xf32, #tpu.memory_space<vmem>>, vector<16x32xf32>
    %c0_4 = arith.constant 0 : index
    %c0_5 = arith.constant 0 : index
    %3 = vector.load %arg5[%c0_4, %c0_5] : memref<16x32xf32, #tpu.memory_space<vmem>>, vector<16x32xf32>
    %4 = vector.extract_strided_slice %1 {offsets = [0, 2], sizes = [16, 30], strides = [1, 1]} : vector<16x32xbf16> to vector<16x30xbf16>
    %5 = vector.extract_strided_slice %1 {offsets = [0, 0], sizes = [16, 2], strides = [1, 1]} : vector<16x32xbf16> to vector<16x2xbf16>
    %6 = tpu.concatenate %4, %5 in 1 : vector<16x30xbf16>, vector<16x2xbf16> -> vector<16x32xbf16>
    %7 = vector.extract_strided_slice %1 {offsets = [0, 30], sizes = [16, 2], strides = [1, 1]} : vector<16x32xbf16> to vector<16x2xbf16>
    %8 = vector.extract_strided_slice %1 {offsets = [0, 0], sizes = [16, 30], strides = [1, 1]} : vector<16x32xbf16> to vector<16x30xbf16>
    %9 = tpu.concatenate %7, %8 in 1 : vector<16x2xbf16>, vector<16x30xbf16> -> vector<16x32xbf16>
    %10 = tpu.iota {dimensions = array<i32: 1>} : vector<16x32xi32>
    %c4_i32 = arith.constant 4 : i32
    %c0_i32 = arith.constant 0 : i32
    %11 = arith.cmpi eq, %c4_i32, %c0_i32 : i32
    %c1_i32 = arith.constant 1 : i32
    %12 = arith.select %11, %c1_i32, %c4_i32 : i32
    %13 = vector.broadcast %12 : i32 to vector<16x32xi32>
    %14 = arith.remsi %10, %13 : vector<16x32xi32>
    %c0_i32_6 = arith.constant 0 : i32
    %15 = vector.broadcast %c0_i32_6 : i32 to vector<16x32xi32>
    %16 = arith.cmpi ne, %14, %15 : vector<16x32xi32>
    %c0_i32_7 = arith.constant 0 : i32
    %17 = vector.broadcast %c0_i32_7 : i32 to vector<16x32xi32>
    %18 = arith.cmpi slt, %14, %17 : vector<16x32xi32>
    %c0_i32_8 = arith.constant 0 : i32
    %19 = arith.cmpi slt, %12, %c0_i32_8 : i32
    %20 = vector.broadcast %19 : i1 to vector<16x32xi1>
    %21 = vector.broadcast %20 : vector<16x32xi1> to vector<16x32xi1>
    %22 = arith.xori %18, %21 : vector<16x32xi1>
    %23 = arith.andi %22, %16 : vector<16x32xi1>
    %24 = vector.broadcast %12 : i32 to vector<16x32xi32>
    %25 = arith.addi %14, %24 : vector<16x32xi32>
    %26 = arith.select %23, %25, %14 : vector<16x32xi1>, vector<16x32xi32>
    %c2_i32 = arith.constant 2 : i32
    %27 = vector.broadcast %c2_i32 : i32 to vector<16x32xi32>
    %28 = arith.cmpi slt, %26, %27 : vector<16x32xi32>
    %29 = arith.select %28, %6, %9 : vector<16x32xi1>, vector<16x32xbf16>
    %30 = arith.extf %1 : vector<16x32xbf16> to vector<16x32xf32>
    %31 = arith.mulf %30, %2 : vector<16x32xf32>
    %32 = arith.extf %29 : vector<16x32xbf16> to vector<16x32xf32>
    %33 = arith.mulf %32, %3 : vector<16x32xf32>
    %34 = arith.addf %31, %33 : vector<16x32xf32>
    %cst = arith.constant 0.353553385 : f32
    %35 = vector.broadcast %cst : f32 to vector<16x32xf32>
    %36 = arith.mulf %34, %35 : vector<16x32xf32>
    %37 = arith.truncf %36 : vector<16x32xf32> to vector<16x32xbf16>
    %c0_9 = arith.constant 0 : index
    %c0_10 = arith.constant 0 : index
    %c32 = arith.constant 32 : index
    %38 = vector.load %arg3[%c0_9, %c0_10, %c32] : memref<1x16x96xbf16, #tpu.memory_space<vmem>>, vector<1x16x32xbf16>
    %39 = vector.shape_cast %38 : vector<1x16x32xbf16> to vector<16x32xbf16>
    %c0_11 = arith.constant 0 : index
    %c0_12 = arith.constant 0 : index
    %40 = vector.load %arg6[%c0_11, %c0_12] : memref<16x32xf32, #tpu.memory_space<vmem>>, vector<16x32xf32>
    %c0_13 = arith.constant 0 : index
    %c0_14 = arith.constant 0 : index
    %41 = vector.load %arg7[%c0_13, %c0_14] : memref<16x32xf32, #tpu.memory_space<vmem>>, vector<16x32xf32>
    %42 = vector.extract_strided_slice %39 {offsets = [0, 2], sizes = [16, 30], strides = [1, 1]} : vector<16x32xbf16> to vector<16x30xbf16>
    %43 = vector.extract_strided_slice %39 {offsets = [0, 0], sizes = [16, 2], strides = [1, 1]} : vector<16x32xbf16> to vector<16x2xbf16>
    %44 = tpu.concatenate %42, %43 in 1 : vector<16x30xbf16>, vector<16x2xbf16> -> vector<16x32xbf16>
    %45 = vector.extract_strided_slice %39 {offsets = [0, 30], sizes = [16, 2], strides = [1, 1]} : vector<16x32xbf16> to vector<16x2xbf16>
    %46 = vector.extract_strided_slice %39 {offsets = [0, 0], sizes = [16, 30], strides = [1, 1]} : vector<16x32xbf16> to vector<16x30xbf16>
    %47 = tpu.concatenate %45, %46 in 1 : vector<16x2xbf16>, vector<16x30xbf16> -> vector<16x32xbf16>
    %48 = tpu.iota {dimensions = array<i32: 1>} : vector<16x32xi32>
    %c4_i32_15 = arith.constant 4 : i32
    %c0_i32_16 = arith.constant 0 : i32
    %49 = arith.cmpi eq, %c4_i32_15, %c0_i32_16 : i32
    %c1_i32_17 = arith.constant 1 : i32
    %50 = arith.select %49, %c1_i32_17, %c4_i32_15 : i32
    %51 = vector.broadcast %50 : i32 to vector<16x32xi32>
    %52 = arith.remsi %48, %51 : vector<16x32xi32>
    %c0_i32_18 = arith.constant 0 : i32
    %53 = vector.broadcast %c0_i32_18 : i32 to vector<16x32xi32>
    %54 = arith.cmpi ne, %52, %53 : vector<16x32xi32>
    %c0_i32_19 = arith.constant 0 : i32
    %55 = vector.broadcast %c0_i32_19 : i32 to vector<16x32xi32>
    %56 = arith.cmpi slt, %52, %55 : vector<16x32xi32>
    %c0_i32_20 = arith.constant 0 : i32
    %57 = arith.cmpi slt, %50, %c0_i32_20 : i32
    %58 = vector.broadcast %57 : i1 to vector<16x32xi1>
    %59 = vector.broadcast %58 : vector<16x32xi1> to vector<16x32xi1>
    %60 = arith.xori %56, %59 : vector<16x32xi1>
    %61 = arith.andi %60, %54 : vector<16x32xi1>
    %62 = vector.broadcast %50 : i32 to vector<16x32xi32>
    %63 = arith.addi %52, %62 : vector<16x32xi32>
    %64 = arith.select %61, %63, %52 : vector<16x32xi1>, vector<16x32xi32>
    %c2_i32_21 = arith.constant 2 : i32
    %65 = vector.broadcast %c2_i32_21 : i32 to vector<16x32xi32>
    %66 = arith.cmpi slt, %64, %65 : vector<16x32xi32>
    %67 = arith.select %66, %44, %47 : vector<16x32xi1>, vector<16x32xbf16>
    %68 = arith.extf %39 : vector<16x32xbf16> to vector<16x32xf32>
    %69 = arith.mulf %68, %40 : vector<16x32xf32>
    %70 = arith.extf %67 : vector<16x32xbf16> to vector<16x32xf32>
    %71 = arith.mulf %70, %41 : vector<16x32xf32>
    %72 = arith.addf %69, %71 : vector<16x32xf32>
    %73 = arith.truncf %72 : vector<16x32xf32> to vector<16x32xbf16>
    %74 = vector.extract_strided_slice %37 {offsets = [0, 0], sizes = [16, 8], strides = [1, 1]} : vector<16x32xbf16> to vector<16x8xbf16>
    %75 = vector.extract_strided_slice %73 {offsets = [0, 0], sizes = [16, 8], strides = [1, 1]} : vector<16x32xbf16> to vector<16x8xbf16>
    %cst_22 = arith.constant dense<0.000000e+00> : vector<16x16xf32>
    %76 = tpu.matmul %74, %75, %cst_22 {dimension_numbers = #tpu.dot_dimension_numbers<[1], [1], [0], [0], [0, 0, 1, 0], [], []>} : vector<16x8xbf16>, vector<16x8xbf16>, vector<16x16xf32> -> vector<16x16xf32>
    %cst_23 = arith.constant dense<0xFF800000> : vector<16xf32>
    %77 = vector.multi_reduction <maximumf>, %76, %cst_23 [1] : vector<16x16xf32> to vector<16xf32>
    %78 = vector.shape_cast %77 : vector<16xf32> to vector<16x1xf32>
    %79 = vector.broadcast %78 : vector<16x1xf32> to vector<16x16xf32>
    %80 = arith.subf %76, %79 : vector<16x16xf32>
    %81 = math.exp %80 : vector<16x16xf32>
    %cst_24 = arith.constant dense<0.000000e+00> : vector<16xf32>
    %82 = vector.multi_reduction <add>, %81, %cst_24 [1] : vector<16x16xf32> to vector<16xf32>
    %83 = vector.shape_cast %82 : vector<16xf32> to vector<16x1xf32>
    %84 = tpu.reciprocal %83 {approx = true} : vector<16x1xf32> -> vector<16x1xf32>
    %85 = vector.broadcast %84 : vector<16x1xf32> to vector<16x16xf32>
    %86 = arith.mulf %81, %85 : vector<16x16xf32>
    %87 = arith.truncf %86 : vector<16x16xf32> to vector<16x16xbf16>
    %c0_25 = arith.constant 0 : index
    %c0_26 = arith.constant 0 : index
    %c64 = arith.constant 64 : index
    %88 = vector.load %arg3[%c0_25, %c0_26, %c64] : memref<1x16x96xbf16, #tpu.memory_space<vmem>>, vector<1x16x8xbf16>
    %89 = vector.shape_cast %88 : vector<1x16x8xbf16> to vector<16x8xbf16>
    %cst_27 = arith.constant dense<0.000000e+00> : vector<16x8xf32>
    %90 = tpu.matmul %87, %89, %cst_27 {dimension_numbers = #tpu.dot_dimension_numbers<[1], [0], [0], [1], [0, 0, 1, 1], [], []>} : vector<16x16xbf16>, vector<16x8xbf16>, vector<16x8xf32> -> vector<16x8xf32>
    %91 = arith.truncf %90 : vector<16x8xf32> to vector<16x8xbf16>
    %c0_28 = arith.constant 0 : index
    %c0_29 = arith.constant 0 : index
    %c0_30 = arith.constant 0 : index
    %92 = vector.load %arg8[%c0_28, %c0_29, %c0_30] : memref<1x16x32xbf16, #tpu.memory_space<vmem>>, vector<1x16x8xbf16>
    %93 = vector.shape_cast %92 : vector<1x16x8xbf16> to vector<16x8xbf16>
    %94 = vector.shape_cast %91 : vector<16x8xbf16> to vector<1x16x8xbf16>
    tpu.vector_store %arg8[%c0_28, %c0_29, %c0_30], %94 {strides = array<i32>} : memref<1x16x32xbf16, #tpu.memory_space<vmem>>, vector<1x16x8xbf16>,
    %95 = vector.extract_strided_slice %37 {offsets = [0, 8], sizes = [16, 8], strides = [1, 1]} : vector<16x32xbf16> to vector<16x8xbf16>
    %96 = vector.extract_strided_slice %73 {offsets = [0, 8], sizes = [16, 8], strides = [1, 1]} : vector<16x32xbf16> to vector<16x8xbf16>
    %cst_31 = arith.constant dense<0.000000e+00> : vector<16x16xf32>
    %97 = tpu.matmul %95, %96, %cst_31 {dimension_numbers = #tpu.dot_dimension_numbers<[1], [1], [0], [0], [0, 0, 1, 0], [], []>} : vector<16x8xbf16>, vector<16x8xbf16>, vector<16x16xf32> -> vector<16x16xf32>
    %cst_32 = arith.constant dense<0xFF800000> : vector<16xf32>
    %98 = vector.multi_reduction <maximumf>, %97, %cst_32 [1] : vector<16x16xf32> to vector<16xf32>
    %99 = vector.shape_cast %98 : vector<16xf32> to vector<16x1xf32>
    %100 = vector.broadcast %99 : vector<16x1xf32> to vector<16x16xf32>
    %101 = arith.subf %97, %100 : vector<16x16xf32>
    %102 = math.exp %101 : vector<16x16xf32>
    %cst_33 = arith.constant dense<0.000000e+00> : vector<16xf32>
    %103 = vector.multi_reduction <add>, %102, %cst_33 [1] : vector<16x16xf32> to vector<16xf32>
    %104 = vector.shape_cast %103 : vector<16xf32> to vector<16x1xf32>
    %105 = tpu.reciprocal %104 {approx = true} : vector<16x1xf32> -> vector<16x1xf32>
    %106 = vector.broadcast %105 : vector<16x1xf32> to vector<16x16xf32>
    %107 = arith.mulf %102, %106 : vector<16x16xf32>
    %108 = arith.truncf %107 : vector<16x16xf32> to vector<16x16xbf16>
    %c0_34 = arith.constant 0 : index
    %c0_35 = arith.constant 0 : index
    %c72 = arith.constant 72 : index
    %109 = vector.load %arg3[%c0_34, %c0_35, %c72] : memref<1x16x96xbf16, #tpu.memory_space<vmem>>, vector<1x16x8xbf16>
    %110 = vector.shape_cast %109 : vector<1x16x8xbf16> to vector<16x8xbf16>
    %cst_36 = arith.constant dense<0.000000e+00> : vector<16x8xf32>
    %111 = tpu.matmul %108, %110, %cst_36 {dimension_numbers = #tpu.dot_dimension_numbers<[1], [0], [0], [1], [0, 0, 1, 1], [], []>} : vector<16x16xbf16>, vector<16x8xbf16>, vector<16x8xf32> -> vector<16x8xf32>
    %112 = arith.truncf %111 : vector<16x8xf32> to vector<16x8xbf16>
    %c0_37 = arith.constant 0 : index
    %c0_38 = arith.constant 0 : index
    %c8 = arith.constant 8 : index
    %113 = vector.load %arg8[%c0_37, %c0_38, %c8] : memref<1x16x32xbf16, #tpu.memory_space<vmem>>, vector<1x16x8xbf16>
    %114 = vector.shape_cast %113 : vector<1x16x8xbf16> to vector<16x8xbf16>
    %115 = vector.shape_cast %112 : vector<16x8xbf16> to vector<1x16x8xbf16>
    tpu.vector_store %arg8[%c0_37, %c0_38, %c8], %115 {strides = array<i32>} : memref<1x16x32xbf16, #tpu.memory_space<vmem>>, vector<1x16x8xbf16>,
    %116 = vector.extract_strided_slice %37 {offsets = [0, 16], sizes = [16, 8], strides = [1, 1]} : vector<16x32xbf16> to vector<16x8xbf16>
    %117 = vector.extract_strided_slice %73 {offsets = [0, 16], sizes = [16, 8], strides = [1, 1]} : vector<16x32xbf16> to vector<16x8xbf16>
    %cst_39 = arith.constant dense<0.000000e+00> : vector<16x16xf32>
    %118 = tpu.matmul %116, %117, %cst_39 {dimension_numbers = #tpu.dot_dimension_numbers<[1], [1], [0], [0], [0, 0, 1, 0], [], []>} : vector<16x8xbf16>, vector<16x8xbf16>, vector<16x16xf32> -> vector<16x16xf32>
    %cst_40 = arith.constant dense<0xFF800000> : vector<16xf32>
    %119 = vector.multi_reduction <maximumf>, %118, %cst_40 [1] : vector<16x16xf32> to vector<16xf32>
    %120 = vector.shape_cast %119 : vector<16xf32> to vector<16x1xf32>
    %121 = vector.broadcast %120 : vector<16x1xf32> to vector<16x16xf32>
    %122 = arith.subf %118, %121 : vector<16x16xf32>
    %123 = math.exp %122 : vector<16x16xf32>
    %cst_41 = arith.constant dense<0.000000e+00> : vector<16xf32>
    %124 = vector.multi_reduction <add>, %123, %cst_41 [1] : vector<16x16xf32> to vector<16xf32>
    %125 = vector.shape_cast %124 : vector<16xf32> to vector<16x1xf32>
    %126 = tpu.reciprocal %125 {approx = true} : vector<16x1xf32> -> vector<16x1xf32>
    %127 = vector.broadcast %126 : vector<16x1xf32> to vector<16x16xf32>
    %128 = arith.mulf %123, %127 : vector<16x16xf32>
    %129 = arith.truncf %128 : vector<16x16xf32> to vector<16x16xbf16>
    %c0_42 = arith.constant 0 : index
    %c0_43 = arith.constant 0 : index
    %c80 = arith.constant 80 : index
    %130 = vector.load %arg3[%c0_42, %c0_43, %c80] : memref<1x16x96xbf16, #tpu.memory_space<vmem>>, vector<1x16x8xbf16>
    %131 = vector.shape_cast %130 : vector<1x16x8xbf16> to vector<16x8xbf16>
    %cst_44 = arith.constant dense<0.000000e+00> : vector<16x8xf32>
    %132 = tpu.matmul %129, %131, %cst_44 {dimension_numbers = #tpu.dot_dimension_numbers<[1], [0], [0], [1], [0, 0, 1, 1], [], []>} : vector<16x16xbf16>, vector<16x8xbf16>, vector<16x8xf32> -> vector<16x8xf32>
    %133 = arith.truncf %132 : vector<16x8xf32> to vector<16x8xbf16>
    %c0_45 = arith.constant 0 : index
    %c0_46 = arith.constant 0 : index
    %c16 = arith.constant 16 : index
    %134 = vector.load %arg8[%c0_45, %c0_46, %c16] : memref<1x16x32xbf16, #tpu.memory_space<vmem>>, vector<1x16x8xbf16>
    %135 = vector.shape_cast %134 : vector<1x16x8xbf16> to vector<16x8xbf16>
    %136 = vector.shape_cast %133 : vector<16x8xbf16> to vector<1x16x8xbf16>
    tpu.vector_store %arg8[%c0_45, %c0_46, %c16], %136 {strides = array<i32>} : memref<1x16x32xbf16, #tpu.memory_space<vmem>>, vector<1x16x8xbf16>,
    %137 = vector.extract_strided_slice %37 {offsets = [0, 24], sizes = [16, 8], strides = [1, 1]} : vector<16x32xbf16> to vector<16x8xbf16>
    %138 = vector.extract_strided_slice %73 {offsets = [0, 24], sizes = [16, 8], strides = [1, 1]} : vector<16x32xbf16> to vector<16x8xbf16>
    %cst_47 = arith.constant dense<0.000000e+00> : vector<16x16xf32>
    %139 = tpu.matmul %137, %138, %cst_47 {dimension_numbers = #tpu.dot_dimension_numbers<[1], [1], [0], [0], [0, 0, 1, 0], [], []>} : vector<16x8xbf16>, vector<16x8xbf16>, vector<16x16xf32> -> vector<16x16xf32>
    %cst_48 = arith.constant dense<0xFF800000> : vector<16xf32>
    %140 = vector.multi_reduction <maximumf>, %139, %cst_48 [1] : vector<16x16xf32> to vector<16xf32>
    %141 = vector.shape_cast %140 : vector<16xf32> to vector<16x1xf32>
    %142 = vector.broadcast %141 : vector<16x1xf32> to vector<16x16xf32>
    %143 = arith.subf %139, %142 : vector<16x16xf32>
    %144 = math.exp %143 : vector<16x16xf32>
    %cst_49 = arith.constant dense<0.000000e+00> : vector<16xf32>
    %145 = vector.multi_reduction <add>, %144, %cst_49 [1] : vector<16x16xf32> to vector<16xf32>
    %146 = vector.shape_cast %145 : vector<16xf32> to vector<16x1xf32>
    %147 = tpu.reciprocal %146 {approx = true} : vector<16x1xf32> -> vector<16x1xf32>
    %148 = vector.broadcast %147 : vector<16x1xf32> to vector<16x16xf32>
    %149 = arith.mulf %144, %148 : vector<16x16xf32>
    %150 = arith.truncf %149 : vector<16x16xf32> to vector<16x16xbf16>
    %c0_50 = arith.constant 0 : index
    %c0_51 = arith.constant 0 : index
    %c88 = arith.constant 88 : index
    %151 = vector.load %arg3[%c0_50, %c0_51, %c88] : memref<1x16x96xbf16, #tpu.memory_space<vmem>>, vector<1x16x8xbf16>
    %152 = vector.shape_cast %151 : vector<1x16x8xbf16> to vector<16x8xbf16>
    %cst_52 = arith.constant dense<0.000000e+00> : vector<16x8xf32>
    %153 = tpu.matmul %150, %152, %cst_52 {dimension_numbers = #tpu.dot_dimension_numbers<[1], [0], [0], [1], [0, 0, 1, 1], [], []>} : vector<16x16xbf16>, vector<16x8xbf16>, vector<16x8xf32> -> vector<16x8xf32>
    %154 = arith.truncf %153 : vector<16x8xf32> to vector<16x8xbf16>
    %c0_53 = arith.constant 0 : index
    %c0_54 = arith.constant 0 : index
    %c24 = arith.constant 24 : index
    %155 = vector.load %arg8[%c0_53, %c0_54, %c24] : memref<1x16x32xbf16, #tpu.memory_space<vmem>>, vector<1x16x8xbf16>
    %156 = vector.shape_cast %155 : vector<1x16x8xbf16> to vector<16x8xbf16>
    %157 = vector.shape_cast %154 : vector<16x8xbf16> to vector<1x16x8xbf16>
    tpu.vector_store %arg8[%c0_53, %c0_54, %c24], %157 {strides = array<i32>} : memref<1x16x32xbf16, #tpu.memory_space<vmem>>, vector<1x16x8xbf16>,
    return
  }
  func.func @transform_0(%arg0: i32, %arg1: i32) -> (i32, i32, i32) {
    %c0_i32 = arith.constant 0 : i32
    %c0_i32_0 = arith.constant 0 : i32
    return %arg0, %arg1, %c0_i32 : i32, i32, i32
  }
  func.func @transform_1(%arg0: i32, %arg1: i32) -> (i32, i32, i32) {
    %c0_i32 = arith.constant 0 : i32
    %c0_i32_0 = arith.constant 0 : i32
    %c0_i32_1 = arith.constant 0 : i32
    return %arg0, %c0_i32, %c0_i32_0 : i32, i32, i32
  }
  func.func @transform_2(%arg0: i32, %arg1: i32) -> (i32, i32) {
    %c0_i32 = arith.constant 0 : i32
    %c0_i32_0 = arith.constant 0 : i32
    return %arg1, %c0_i32 : i32, i32
  }
  func.func @transform_3(%arg0: i32, %arg1: i32) -> (i32, i32) {
    %c0_i32 = arith.constant 0 : i32
    %c0_i32_0 = arith.constant 0 : i32
    return %arg1, %c0_i32 : i32, i32
  }
  func.func @transform_4(%arg0: i32, %arg1: i32) -> (i32, i32) {
    %c0_i32 = arith.constant 0 : i32
    %c0_i32_0 = arith.constant 0 : i32
    %c0_i32_1 = arith.constant 0 : i32
    return %c0_i32, %c0_i32_0 : i32, i32
  }
  func.func @transform_5(%arg0: i32, %arg1: i32) -> (i32, i32) {
    %c0_i32 = arith.constant 0 : i32
    %c0_i32_0 = arith.constant 0 : i32
    %c0_i32_1 = arith.constant 0 : i32
    return %c0_i32, %c0_i32_0 : i32, i32
  }
  func.func @transform_6(%arg0: i32, %arg1: i32) -> (i32, i32, i32) {
    %c0_i32 = arith.constant 0 : i32
    %c0_i32_0 = arith.constant 0 : i32
    return %arg0, %arg1, %c0_i32 : i32, i32, i32
  }
}

</mosaic_0001>

<llo_original>
// kernel: mhsa_forward.5
$region0: #{mhsa_forward.5}
  #allocation0 [shape = 'u32[]', space=smem, size = 0x4, offset = 0x4, fixed_abs, tag = 'smem constant byte address 0x4 - core index']
  #allocation1 [shape = 'u32[144,128]{1,0:T(1,128)}', space=vmem, size = 0x12000, scoped, tag = 'internal scratch']
  #allocation2 [shape = 'f32[32,32]{1,0:T(8,128)}', space=vmem, size = 0x4000, scoped, tag = 'scratch operand']
  %s0 = inlined_call_operand.hbm [shape: bf16[32,32], index: 0, kind: input, shape index: {}]
  %s1 = inlined_call_operand.hbm [shape: bf16[32,32], index: 1, kind: input, shape index: {}]
  %s2 = inlined_call_operand.vmem [shape: f32[1,32], index: 2, kind: input, shape index: {}]
  %s3 = inlined_call_operand.hbm [shape: f32[32,32], index: 3, kind: output, shape index: {}]
  %s4 = sld [smem:[#allocation0]]
  $region38: #{mhsa_forward.5} parent=0
    _
  %s6 = ssub.s32 1, %s4
  %s7 = scalar_select 0, %s6, %s4
  $region1: #{mhsa_forward.5} parent=0
    #allocation3 [shape = 'u8[8192]{0}', space=vmem, size = 0x2000, scoped, tag = 'input window, operand 0, single buffered']
    #allocation4 [shape = 's32[1]{0}', space=sflag, size = 0x4, scoped, tag = 'scoped memory for mhsa_forward.5']
    #allocation5 [shape = 's32[1]{0}', space=sflag, size = 0x4, scoped, tag = 'scoped memory for mhsa_forward.5']
    #allocation6 [shape = 'u8[8192]{0}', space=vmem, size = 0x2000, scoped, tag = 'input window, operand 1, single buffered']
    #allocation7 [shape = 's32[1]{0}', space=sflag, size = 0x4, scoped, tag = 'scoped memory for mhsa_forward.5']
    #allocation8 [shape = 'u8[16384]{0}', space=vmem, size = 0x4000, scoped, tag = 'output window, operand 0, single buffered']
    %8 = vsyncpa [#allocation4], 0
    %9 = vsyncpa [#allocation7], 0
    %10 = vsyncpa [#allocation5], 0
    // Predicated region
    $region2: #{mhsa_forward.5} parent=1 // pred_check
      _
    $region3: #{mhsa_forward.5} parent=1 // pred_check_branch
      %12 = sbr.rel (0) target = $region5
    $region4: #{mhsa_forward.5} parent=1 // pred_region
      %s14 = ssub.s32 256, 256
      %15 = vsyncadd [#allocation4], %s14
      %s16 = sshll.u32 [#allocation3], 4
      %s17 = int_to_ptr.vmem [resolvable:$true] %s16
      %22 = dma.hbm_to_vmem [thread:$0]  %s0, 256, %s17, [#allocation4], 64, 64, 4
    $region5: #{mhsa_forward.5} parent=1 // pred_fallthru
      _
    // Predicated region
    $region6: #{mhsa_forward.5} parent=1 // pred_check
      _
    $region7: #{mhsa_forward.5} parent=1 // pred_check_branch
      %24 = sbr.rel (0) target = $region9
    $region8: #{mhsa_forward.5} parent=1 // pred_region
      %s26 = ssub.s32 256, 256
      %27 = vsyncadd [#allocation7], %s26
      %s28 = sshll.u32 [#allocation6], 4
      %s29 = int_to_ptr.vmem [resolvable:$true] %s28
      %34 = dma.hbm_to_vmem [thread:$0]  %s1, 256, %s29, [#allocation7], 64, 64, 4
    $region9: #{mhsa_forward.5} parent=1 // pred_fallthru
      _
    // Predicated region
    $region10: #{mhsa_forward.5} parent=1 // pred_check
      _
    $region11: #{mhsa_forward.5} parent=1 // pred_check_branch
      %36 = sbr.rel (0) target = $region13
    $region12: #{mhsa_forward.5} parent=1 // pred_region
      _
    $region13: #{mhsa_forward.5} parent=1 // pred_fallthru
      _
    // Predicated region
    $region14: #{mhsa_forward.5} parent=1 // pred_check
      _
    $region15: #{mhsa_forward.5} parent=1 // pred_check_branch
      %38 = sbr.rel (0) target = $region17
    $region16: #{mhsa_forward.5} parent=1 // pred_region
      %39 = dma.done [#allocation4], 256
    $region17: #{mhsa_forward.5} parent=1 // pred_fallthru
      _
    // Predicated region
    $region18: #{mhsa_forward.5} parent=1 // pred_check
      _
    $region19: #{mhsa_forward.5} parent=1 // pred_check_branch
      %41 = sbr.rel (0) target = $region21
    $region20: #{mhsa_forward.5} parent=1 // pred_region
      %42 = dma.done [#allocation7], 256
    $region21: #{mhsa_forward.5} parent=1 // pred_fallthru
      _
    %p44 = scmp.eq.s32.totalorder 0, 0
    // Predicated region
    $region22: #{mhsa_forward.5} parent=1 // pred_check
      %p45 = pneg %p44
    $region23: #{mhsa_forward.5} parent=1 // pred_check_branch
      %47 = sbr.rel (%p45) target = $region25
    $region24: #{mhsa_forward.5} parent=1 // pred_region
      %vm48 = vcmask 261120
      %49 = vst.msk [vmem:[#allocation2] sm:$0xff] %vm48, 0.0
      %50 = vst.msk [vmem:[#allocation2 + $0x8] sm:$0xff] %vm48, 0.0
      %51 = vst.msk [vmem:[#allocation2 + $0x10] sm:$0xff] %vm48, 0.0
      %52 = vst.msk [vmem:[#allocation2 + $0x18] sm:$0xff] %vm48, 0.0
    $region25: #{mhsa_forward.5} parent=1 // pred_fallthru
      _
    %v53 = vld [vmem:[#allocation2] sm:$0xff]
    %v54 = vld [vmem:[#allocation2 + $0x8] sm:$0xff]
    %v55 = vld [vmem:[#allocation2 + $0x10] sm:$0xff]
    %v56 = vld [vmem:[#allocation2 + $0x18] sm:$0xff]
    %v57 = vld [vmem:[#allocation3] sm:$0xf]
    %v58 = vld [vmem:[#allocation3 + $0x4] sm:$0xf]
    %v59 = vld [vmem:[#allocation3 + $0x8] sm:$0xf]
    %v60 = vld [vmem:[#allocation3 + $0xc] sm:$0xf]
    %v61 = vld [vmem:[#allocation6] sm:$0xf]
    %v62 = vld [vmem:[#allocation6 + $0x4] sm:$0xf]
    %v63 = vld [vmem:[#allocation6 + $0x8] sm:$0xf]
    %v64 = vld [vmem:[#allocation6 + $0xc] sm:$0xf]
    %v69 = vunpack.c.l.b16 %v57
    %v70 = vunpack.c.l.b16 %v58
    %v71 = vunpack.c.l.b16 %v59
    %v72 = vunpack.c.l.b16 %v60
    %v73 = vpack.c.b16 %v70, %v69
    %v74 = vpack.c.b16 %v72, %v71
    %v79 = vunpack.c.l.b16 %v61
    %v80 = vunpack.c.l.b16 %v62
    %v81 = vunpack.c.l.b16 %v63
    %v82 = vunpack.c.l.b16 %v64
    %v83 = vpack.c.b16 %v80, %v79
    %v84 = vpack.c.b16 %v82, %v81
    %vm87 = vcmask 261120
    %v89 = vsel %vm87, %v73, 0
    %v92 = vsel %vm87, %v74, 0
    %94 = vmatprep.subr.bf16.mxu0 0
    %95 = vmatpush1.bf16.msra.mxu0 %v83
    %96 = vmatprep.subr.bf16.mxu0 0
    %97 = vmatpush1.bf16.msra.mxu0 %v84
    %98 = vmatprep.subr.bf16.mxu0 0
    %99 = vmatpush1.bf16.msra.mxu0 0
    %100 = vmatprep.subr.bf16.mxu0 0
    %101 = vmatpush1.bf16.msra.mxu0 0
    %102 = vmatprep.subr.bf16.mxu0 0
    %103 = vmatpush1.bf16.msra.mxu0 0
    %104 = vmatprep.subr.bf16.mxu0 0
    %105 = vmatpush1.bf16.msra.mxu0 0
    %106 = vmatprep.subr.bf16.mxu0 0
    %107 = vmatpush1.bf16.msra.mxu0 0
    %108 = vmatprep.subr.bf16.mxu0 0
    %109 = vmatpush1.bf16.msra.mxu0 0
    %110 = vmatprep.subr.bf16.mxu0 0
    %111 = vmatpush1.bf16.msra.mxu0 0
    %112 = vmatprep.subr.bf16.mxu0 0
    %113 = vmatpush1.bf16.msra.mxu0 0
    %114 = vmatprep.subr.bf16.mxu0 0
    %115 = vmatpush1.bf16.msra.mxu0 0
    %116 = vmatprep.subr.bf16.mxu0 0
    %117 = vmatpush1.bf16.msra.mxu0 0
    %118 = vmatprep.subr.bf16.mxu0 0
    %119 = vmatpush1.bf16.msra.mxu0 0
    %120 = vmatprep.subr.bf16.mxu0 0
    %121 = vmatpush1.bf16.msra.mxu0 0
    %122 = vmatprep.subr.bf16.mxu0 0
    %123 = vmatpush1.bf16.msra.mxu0 0
    %124 = vmatprep.subr.bf16.mxu0 0
    %125 = vmatpush1.bf16.msra.mxu0 0
    %126 = vmatprep.mubr.bf16.mxu0 0
    %127 = vmatmul.mubr.bf16.gmra.mrb[0].mxu0 %v89
    %v128 = vpop.f32.mrb[0].mxu0
    %v129 = vadd.f32 0.0, %v128
    %v130 = vpop.f32.mrb[0].mxu0
    %v131 = vpop.f32.mrb[0].mxu0
    %v132 = vadd.f32 0.0, %v131
    %v133 = vpop.f32.mrb[0].mxu0
    %134 = vmatprep.mubr.bf16.mxu0 0
    %135 = vmatmul.mubr.bf16.gmra.mrb[0].mxu0 %v92
    %v136 = vpop.f32.mrb[0].mxu0
    %v137 = vadd.f32 0.0, %v136
    %v138 = vpop.f32.mrb[0].mxu0
    %v139 = vpop.f32.mrb[0].mxu0
    %v140 = vadd.f32 0.0, %v139
    %v141 = vpop.f32.mrb[0].mxu0
    %142 = vdwg.mxu0
    %v143 = vadd.f32 %v53, %v129
    %v144 = vadd.f32 %v54, %v132
    %v145 = vadd.f32 %v55, %v137
    %v146 = vadd.f32 %v56, %v140
    %147 = vst.msk [vmem:[#allocation2] sm:$0xff] %vm87, %v143
    %148 = vst.msk [vmem:[#allocation2 + $0x8] sm:$0xff] %vm87, %v144
    %149 = vst.msk [vmem:[#allocation2 + $0x10] sm:$0xff] %vm87, %v145
    %150 = vst.msk [vmem:[#allocation2 + $0x18] sm:$0xff] %vm87, %v146
    // Predicated region
    $region26: #{mhsa_forward.5} parent=1 // pred_check
      %p151 = pneg %p44
    $region27: #{mhsa_forward.5} parent=1 // pred_check_branch
      %153 = sbr.rel (%p151) target = $region29
    $region28: #{mhsa_forward.5} parent=1 // pred_region
      %v154 = vld [vmem:[#allocation2] sm:$0xff]
      %v155 = vld [vmem:[#allocation2 + $0x8] sm:$0xff]
      %v156 = vld [vmem:[#allocation2 + $0x10] sm:$0xff]
      %v157 = vld [vmem:[#allocation2 + $0x18] sm:$0xff]
      %v158 = vld [vmem:[%s2] sm:$0x1]
      %v160 = vlaneseq
      %v161 = vshrl.u32 %v160, 7
      %v162 = vsub.s32 0, %v161
      %v163 = vrot.slane %v158, %v162
      %v165 = vadd.f32 %v154, %v163
      %v166 = vadd.f32 %v155, %v163
      %v167 = vadd.f32 %v156, %v163
      %v168 = vadd.f32 %v157, %v163
      %169 = vst.msk [vmem:[#allocation8] sm:$0xff] %vm87, %v165
      %170 = vst.msk [vmem:[#allocation8 + $0x8] sm:$0xff] %vm87, %v166
      %171 = vst.msk [vmem:[#allocation8 + $0x10] sm:$0xff] %vm87, %v167
      %172 = vst.msk [vmem:[#allocation8 + $0x18] sm:$0xff] %vm87, %v168
    $region29: #{mhsa_forward.5} parent=1 // pred_fallthru
      _
    // Predicated region
    $region30: #{mhsa_forward.5} parent=1 // pred_check
      _
    $region31: #{mhsa_forward.5} parent=1 // pred_check_branch
      %174 = sbr.rel (0) target = $region33
    $region32: #{mhsa_forward.5} parent=1 // pred_region
      %s176 = ssub.s32 512, 512
      %177 = vsyncadd [#allocation5], %s176
      %s178 = sshll.u32 [#allocation8], 4
      %s179 = int_to_ptr.vmem [resolvable:$true] %s178
      %184 = dma.vmem_to_hbm [thread:$0]  %s179, 512, %s3, [#allocation5], 128, 128, 8
    $region33: #{mhsa_forward.5} parent=1 // pred_fallthru
      _
    // Predicated region
    $region34: #{mhsa_forward.5} parent=1 // pred_check
      _
    $region35: #{mhsa_forward.5} parent=1 // pred_check_branch
      %186 = sbr.rel (0) target = $region37
    $region36: #{mhsa_forward.5} parent=1 // pred_region
      %187 = dma.done [#allocation5], 512
    $region37: #{mhsa_forward.5} parent=1 // pred_fallthru
      _
    %188 = vsyncpa [#allocation4], 1
    %189 = vsyncpa [#allocation7], 1
    %190 = vsyncpa [#allocation5], 1

// kernel: mhsa_forward.3
$region0: #{mhsa_forward.3}
  #allocation0 [shape = 'u32[]', space=smem, size = 0x4, offset = 0x4, fixed_abs, tag = 'smem constant byte address 0x4 - core index']
  #allocation1 [shape = 'u32[144,128]{1,0:T(1,128)}', space=vmem, size = 0x12000, scoped, tag = 'internal scratch']
  #allocation2 [shape = 'f32[32,96]{1,0:T(8,128)}', space=vmem, size = 0x4000, scoped, tag = 'scratch operand']
  %s0 = inlined_call_operand.vmem [shape: bf16[32,32], index: 0, kind: input, shape index: {}]
  %s1 = inlined_call_operand.vmem [shape: bf16[32,96], index: 1, kind: input, shape index: {}]
  %s2 = inlined_call_operand.vmem [shape: f32[1,96], index: 2, kind: input, shape index: {}]
  %s3 = inlined_call_operand.hbm [shape: bf16[32,96], index: 3, kind: output, shape index: {}]
  %s4 = sld [smem:[#allocation0]]
  $region30: #{mhsa_forward.3} parent=0
    _
  %s6 = ssub.s32 1, %s4
  %s7 = scalar_select 0, %s6, %s4
  $region1: #{mhsa_forward.3} parent=0
    #allocation3 [shape = 'u8[8192]{0}', space=vmem, size = 0x2000, scoped, tag = 'output window, operand 0, single buffered']
    #allocation4 [shape = 's32[1]{0}', space=sflag, size = 0x4, scoped, tag = 'scoped memory for mhsa_forward.3']
    %8 = vsyncpa [#allocation4], 0
    // Predicated region
    $region2: #{mhsa_forward.3} parent=1 // pred_check
      _
    $region3: #{mhsa_forward.3} parent=1 // pred_check_branch
      %10 = sbr.rel (0) target = $region5
    $region4: #{mhsa_forward.3} parent=1 // pred_region
      _
    $region5: #{mhsa_forward.3} parent=1 // pred_fallthru
      _
    // Predicated region
    $region6: #{mhsa_forward.3} parent=1 // pred_check
      _
    $region7: #{mhsa_forward.3} parent=1 // pred_check_branch
      %12 = sbr.rel (0) target = $region9
    $region8: #{mhsa_forward.3} parent=1 // pred_region
      _
    $region9: #{mhsa_forward.3} parent=1 // pred_fallthru
      _
    // Predicated region
    $region10: #{mhsa_forward.3} parent=1 // pred_check
      _
    $region11: #{mhsa_forward.3} parent=1 // pred_check_branch
      %14 = sbr.rel (0) target = $region13
    $region12: #{mhsa_forward.3} parent=1 // pred_region
      _
    $region13: #{mhsa_forward.3} parent=1 // pred_fallthru
      _
    %p16 = scmp.eq.s32.totalorder 0, 0
    // Predicated region
    $region14: #{mhsa_forward.3} parent=1 // pred_check
      %p17 = pneg %p16
    $region15: #{mhsa_forward.3} parent=1 // pred_check_branch
      %19 = sbr.rel (%p17) target = $region17
    $region16: #{mhsa_forward.3} parent=1 // pred_region
      %vm20 = vcmask 785408
      %21 = vst.msk [vmem:[#allocation2] sm:$0xff] %vm20, 0.0
      %22 = vst.msk [vmem:[#allocation2 + $0x8] sm:$0xff] %vm20, 0.0
      %23 = vst.msk [vmem:[#allocation2 + $0x10] sm:$0xff] %vm20, 0.0
      %24 = vst.msk [vmem:[#allocation2 + $0x18] sm:$0xff] %vm20, 0.0
    $region17: #{mhsa_forward.3} parent=1 // pred_fallthru
      _
    %v25 = vld [vmem:[#allocation2] sm:$0xff]
    %v26 = vld [vmem:[#allocation2 + $0x8] sm:$0xff]
    %v27 = vld [vmem:[#allocation2 + $0x10] sm:$0xff]
    %v28 = vld [vmem:[#allocation2 + $0x18] sm:$0xff]
    %v29 = vld [vmem:[%s0] sm:$0xf]
    %v30 = vld [vmem:[%s0 + $0x4] sm:$0xf]
    %v31 = vld [vmem:[%s0 + $0x8] sm:$0xf]
    %v32 = vld [vmem:[%s0 + $0xc] sm:$0xf]
    %v33 = vld [vmem:[%s1] sm:$0xf]
    %v34 = vld [vmem:[%s1 + $0x4] sm:$0xf]
    %v35 = vld [vmem:[%s1 + $0x8] sm:$0xf]
    %v36 = vld [vmem:[%s1 + $0xc] sm:$0xf]
    %v41 = vunpack.c.l.b16 %v29
    %v42 = vunpack.c.l.b16 %v30
    %v43 = vunpack.c.l.b16 %v31
    %v44 = vunpack.c.l.b16 %v32
    %v45 = vpack.c.b16 %v42, %v41
    %v46 = vpack.c.b16 %v44, %v43
    %v51 = vunpack.c.l.b16 %v33
    %v52 = vunpack.c.l.b16 %v34
    %v53 = vunpack.c.l.b16 %v35
    %v54 = vunpack.c.l.b16 %v36
    %v55 = vpack.c.b16 %v52, %v51
    %v56 = vpack.c.b16 %v54, %v53
    %vm59 = vcmask 261120
    %v61 = vsel %vm59, %v45, 0
    %v64 = vsel %vm59, %v46, 0
    %66 = vmatprep.subr.bf16.mxu0 0
    %67 = vmatpush1.bf16.msra.mxu0 %v55
    %68 = vmatprep.subr.bf16.mxu0 0
    %69 = vmatpush1.bf16.msra.mxu0 %v56
    %70 = vmatprep.subr.bf16.mxu0 0
    %71 = vmatpush1.bf16.msra.mxu0 0
    %72 = vmatprep.subr.bf16.mxu0 0
    %73 = vmatpush1.bf16.msra.mxu0 0
    %74 = vmatprep.subr.bf16.mxu0 0
    %75 = vmatpush1.bf16.msra.mxu0 0
    %76 = vmatprep.subr.bf16.mxu0 0
    %77 = vmatpush1.bf16.msra.mxu0 0
    %78 = vmatprep.subr.bf16.mxu0 0
    %79 = vmatpush1.bf16.msra.mxu0 0
    %80 = vmatprep.subr.bf16.mxu0 0
    %81 = vmatpush1.bf16.msra.mxu0 0
    %82 = vmatprep.subr.bf16.mxu0 0
    %83 = vmatpush1.bf16.msra.mxu0 0
    %84 = vmatprep.subr.bf16.mxu0 0
    %85 = vmatpush1.bf16.msra.mxu0 0
    %86 = vmatprep.subr.bf16.mxu0 0
    %87 = vmatpush1.bf16.msra.mxu0 0
    %88 = vmatprep.subr.bf16.mxu0 0
    %89 = vmatpush1.bf16.msra.mxu0 0
    %90 = vmatprep.subr.bf16.mxu0 0
    %91 = vmatpush1.bf16.msra.mxu0 0
    %92 = vmatprep.subr.bf16.mxu0 0
    %93 = vmatpush1.bf16.msra.mxu0 0
    %94 = vmatprep.subr.bf16.mxu0 0
    %95 = vmatpush1.bf16.msra.mxu0 0
    %96 = vmatprep.subr.bf16.mxu0 0
    %97 = vmatpush1.bf16.msra.mxu0 0
    %98 = vmatprep.mubr.bf16.mxu0 0
    %99 = vmatmul.mubr.bf16.gmra.mrb[0].mxu0 %v61
    %v100 = vpop.f32.mrb[0].mxu0
    %v101 = vadd.f32 0.0, %v100
    %v102 = vpop.f32.mrb[0].mxu0
    %v103 = vpop.f32.mrb[0].mxu0
    %v104 = vadd.f32 0.0, %v103
    %v105 = vpop.f32.mrb[0].mxu0
    %106 = vmatprep.mubr.bf16.mxu0 0
    %107 = vmatmul.mubr.bf16.gmra.mrb[0].mxu0 %v64
    %v108 = vpop.f32.mrb[0].mxu0
    %v109 = vadd.f32 0.0, %v108
    %v110 = vpop.f32.mrb[0].mxu0
    %v111 = vpop.f32.mrb[0].mxu0
    %v112 = vadd.f32 0.0, %v111
    %v113 = vpop.f32.mrb[0].mxu0
    %114 = vdwg.mxu0
    %v115 = vadd.f32 %v25, %v101
    %v116 = vadd.f32 %v26, %v104
    %v117 = vadd.f32 %v27, %v109
    %v118 = vadd.f32 %v28, %v112
    %vm119 = vcmask 785408
    %120 = vst.msk [vmem:[#allocation2] sm:$0xff] %vm119, %v115
    %121 = vst.msk [vmem:[#allocation2 + $0x8] sm:$0xff] %vm119, %v116
    %122 = vst.msk [vmem:[#allocation2 + $0x10] sm:$0xff] %vm119, %v117
    %123 = vst.msk [vmem:[#allocation2 + $0x18] sm:$0xff] %vm119, %v118
    // Predicated region
    $region18: #{mhsa_forward.3} parent=1 // pred_check
      %p124 = pneg %p16
    $region19: #{mhsa_forward.3} parent=1 // pred_check_branch
      %126 = sbr.rel (%p124) target = $region21
    $region20: #{mhsa_forward.3} parent=1 // pred_region
      %v127 = vld [vmem:[#allocation2] sm:$0xff]
      %v128 = vld [vmem:[#allocation2 + $0x8] sm:$0xff]
      %v129 = vld [vmem:[#allocation2 + $0x10] sm:$0xff]
      %v130 = vld [vmem:[#allocation2 + $0x18] sm:$0xff]
      %v131 = vld [vmem:[%s2] sm:$0x1]
      %v133 = vlaneseq
      %v134 = vshrl.u32 %v133, 7
      %v135 = vsub.s32 0, %v134
      %v136 = vrot.slane %v131, %v135
      %v138 = vadd.f32 %v127, %v136
      %v139 = vadd.f32 %v128, %v136
      %v140 = vadd.f32 %v129, %v136
      %v141 = vadd.f32 %v130, %v136
      %v142 = vpack.c.bf16 %v139, %v138
      %v143 = vpack.c.bf16 %v141, %v140
      %v146 = vunpack.c.l.b16 %v142
      %v147 = vunpack.c.h.b16 %v142
      %v148 = vunpack.c.l.b16 %v143
      %v149 = vunpack.c.h.b16 %v143
      %v150 = vpack.c.b16 %v146, %v146
      %v151 = vpack.c.b16 %v147, %v147
      %v152 = vpack.c.b16 %v148, %v148
      %v153 = vpack.c.b16 %v149, %v149
      %vm158 = vcmask 781312
      %159 = vst.msk [vmem:[#allocation3] sm:$0xf] %vm158, %v150
      %160 = vst.msk [vmem:[#allocation3 + $0x4] sm:$0xf] %vm158, %v151
      %161 = vst.msk [vmem:[#allocation3 + $0x8] sm:$0xf] %vm158, %v152
      %162 = vst.msk [vmem:[#allocation3 + $0xc] sm:$0xf] %vm158, %v153
    $region21: #{mhsa_forward.3} parent=1 // pred_fallthru
      _
    // Predicated region
    $region22: #{mhsa_forward.3} parent=1 // pred_check
      _
    $region23: #{mhsa_forward.3} parent=1 // pred_check_branch
      %164 = sbr.rel (0) target = $region25
    $region24: #{mhsa_forward.3} parent=1 // pred_region
      %s166 = ssub.s32 256, 256
      %167 = vsyncadd [#allocation4], %s166
      %s168 = sshll.u32 [#allocation3], 4
      %s169 = int_to_ptr.vmem [resolvable:$true] %s168
      %174 = dma.vmem_to_hbm [thread:$0]  %s169, 256, %s3, [#allocation4], 64, 64, 4
    $region25: #{mhsa_forward.3} parent=1 // pred_fallthru
      _
    // Predicated region
    $region26: #{mhsa_forward.3} parent=1 // pred_check
      _
    $region27: #{mhsa_forward.3} parent=1 // pred_check_branch
      %176 = sbr.rel (0) target = $region29
    $region28: #{mhsa_forward.3} parent=1 // pred_region
      %177 = dma.done [#allocation4], 256
    $region29: #{mhsa_forward.3} parent=1 // pred_fallthru
      _
    %178 = vsyncpa [#allocation4], 1

// kernel: mhsa_forward.4
$region0: #{mhsa_forward.4}
  #allocation0 [shape = 'u32[]', space=smem, size = 0x4, offset = 0x4, fixed_abs, tag = 'smem constant byte address 0x4 - core index']
  #allocation1 [shape = 'u32[144,128]{1,0:T(1,128)}', space=vmem, size = 0x12000, scoped, tag = 'internal scratch']
  %s0 = inlined_call_operand.hbm [shape: bf16[2,16,96], index: 0, kind: input, shape index: {}, may-alias: {0,1}]
  %s1 = inlined_call_operand.hbm [shape: bf16[2,16,96], index: 1, kind: input, shape index: {}, may-alias: {0,1}]
  %s2 = inlined_call_operand.hbm [shape: f32[16,32], index: 2, kind: input, shape index: {}, may-alias: {2,4}]
  %s3 = inlined_call_operand.hbm [shape: f32[16,32], index: 3, kind: input, shape index: {}, may-alias: {3,5}]
  %s4 = inlined_call_operand.hbm [shape: f32[16,32], index: 4, kind: input, shape index: {}, may-alias: {2,4}]
  %s5 = inlined_call_operand.hbm [shape: f32[16,32], index: 5, kind: input, shape index: {}, may-alias: {3,5}]
  %s6 = inlined_call_operand.hbm [shape: bf16[2,16,32], index: 6, kind: output, shape index: {}]
  %s7 = sld [smem:[#allocation0]]
  $region81: #{mhsa_forward.4} parent=0
    _
  %s9 = ssub.s32 1, %s7
  %s10 = scalar_select 0, %s9, %s7
  $region1: #{mhsa_forward.4} parent=0
    #allocation2 [shape = 'u8[8192]{0}', space=vmem, size = 0x2000, scoped, tag = 'input window, operand 0']
    #allocation3 [shape = 's32[2]{0}', space=sflag, size = 0x8, scoped, tag = 'scoped memory for mhsa_forward.4']
    #allocation4 [shape = 's32[2]{0}', space=sflag, size = 0x8, scoped, tag = 'scoped memory for mhsa_forward.4']
    #allocation5 [shape = 'u8[8192]{0}', space=vmem, size = 0x2000, scoped, tag = 'input window, operand 1']
    #allocation6 [shape = 's32[2]{0}', space=sflag, size = 0x8, scoped, tag = 'scoped memory for mhsa_forward.4']
    #allocation7 [shape = 'u8[8192]{0}', space=vmem, size = 0x2000, scoped, tag = 'input window, operand 2, single buffered']
    #allocation8 [shape = 'u8[8192]{0}', space=vmem, size = 0x2000, scoped, tag = 'input window, operand 3, single buffered']
    #allocation9 [shape = 's32[1]{0}', space=sflag, size = 0x4, scoped, tag = 'scoped memory for mhsa_forward.4']
    #allocation10 [shape = 'u8[8192]{0}', space=vmem, size = 0x2000, scoped, tag = 'input window, operand 4, single buffered']
    #allocation11 [shape = 'u8[8192]{0}', space=vmem, size = 0x2000, scoped, tag = 'input window, operand 5, single buffered']
    #allocation12 [shape = 's32[1]{0}', space=sflag, size = 0x4, scoped, tag = 'scoped memory for mhsa_forward.4']
    #allocation13 [shape = 'u8[8192]{0}', space=vmem, size = 0x2000, scoped, tag = 'output window, operand 0']
    %11 = vsyncpa [#allocation3], 0
    %s12 = scalar_lea.sflag [#allocation3], 1
    %13 = vsyncpa %s12, 0
    %14 = vsyncpa [#allocation6], 0
    %s15 = scalar_lea.sflag [#allocation6], 1
    %16 = vsyncpa %s15, 0
    %17 = vsyncpa [#allocation9], 0
    %18 = vsyncpa [#allocation12], 0
    %19 = vsyncpa [#allocation4], 0
    %s20 = scalar_lea.sflag [#allocation4], 1
    %21 = vsyncpa %s20, 0
    loop: start=0, step=1, limit=4
    $region2: #{mhsa_forward.4} parent=1 // loop_pre_header
      _
    $region3: #{mhsa_forward.4} parent=1 // loop_header
      %s23 = sphi 0, %s27
      %p24 = scmp.ge.s32.totalorder %s23, 4
      %s30 = sphi 0, %s42
      %s31 = sphi 0, %s38
      %s32 = sphi 0, %s30
      %s33 = sphi 0, %s31
      %s34 = sphi 0, %s32
      %s35 = sphi 0, %s33
      %s47 = sphi 0, %s49
      %s50 = sphi 0, %s47
      %s51 = sphi 0, %s50
      %s67 = sphi 0, %s51
      %s73 = sphi 0, %s75
      %s76 = sphi 0, %s73
      %s77 = sphi 0, %s76
      %s93 = sphi 0, %s77
      %s99 = sphi 0, %s101
      %s102 = sphi 0, %s99
      %s103 = sphi 0, %s102
      %s119 = sphi 0, %s103
      %s125 = sphi 0, %s127
      %s128 = sphi 0, %s125
      %s129 = sphi 0, %s128
      %s145 = sphi 0, %s129
      %s149 = sphi 0, %s149
      %s151 = sphi 0, %s149
      %s152 = sphi 0, %s151
      %s166 = sphi 0, %s152
      %s170 = sphi 0, %s170
      %s172 = sphi 0, %s170
      %s173 = sphi 0, %s172
      %s187 = sphi 0, %s173
      %s195 = sphi 0, %s197
      %s198 = sphi 0, %s195
      %s199 = sphi 0, %s198
      %s215 = sphi 0, %s199
    $region4: #{mhsa_forward.4} parent=1 // loop_header_branch
      %26 = sbr.rel (%p24) target = $region8
    $region5: #{mhsa_forward.4} parent=1 // loop_body
      %s28 = ssub.s32 %s23, 1
      %s29 = ssub.s32 %s23, 2
      %s36 = sadd.s32 1, %s31
      %p37 = scmp.ge.s32.totalorder %s36, 1
      %s38 = scalar_select %p37, 0, %s36
      %s39 = sadd.s32 1, %s30
      %s40 = scalar_select %p37, %s39, %s30
      %p41 = scmp.ge.s32.totalorder %s40, 2
      %s42 = scalar_select %p41, 0, %s40
      %s43 = ssub.s32 %s30, %s42
      %s44 = ssub.s32 %s31, %s38
      %s45 = sor.u32 %s43, %s44
      %p46 = scmp.eq.s32.totalorder %s45, 0
      %s48 = sadd.s32 %s47, 1
      %s49 = scalar_select %p46, %s47, %s48
      %p52 = pneg %p46
      %p53 = scmp.eq.s32.totalorder %s23, 1
      %p54 = por %p52, %p53
      %p55 = scmp.ne.s32.totalorder %s47, %s50
      %p56 = scmp.eq.s32.totalorder %s23, 0
      %p57 = por %p55, %p56
      %p58 = scmp.ne.s32.totalorder %s47, %s50
      %p59 = scmp.eq.s32.totalorder %s28, 1
      %p60 = por %p58, %p59
      %p61 = scmp.ne.s32.totalorder %s50, %s51
      %p62 = scmp.eq.s32.totalorder %s28, 0
      %p63 = por %p61, %p62
      %p64 = scmp.ne.s32.totalorder %s50, %s51
      %p65 = scmp.eq.s32.totalorder %s29, 1
      %p66 = por %p64, %p65
      %p68 = scmp.ne.s32.totalorder %s51, %s67
      %p69 = scmp.eq.s32.totalorder %s29, 0
      %p70 = por %p68, %p69
      %s71 = ssub.s32 %s30, %s42
      %p72 = scmp.eq.s32.totalorder %s71, 0
      %s74 = sadd.s32 %s73, 1
      %s75 = scalar_select %p72, %s73, %s74
      %p78 = pneg %p72
      %p79 = scmp.eq.s32.totalorder %s23, 1
      %p80 = por %p78, %p79
      %p81 = scmp.ne.s32.totalorder %s73, %s76
      %p82 = scmp.eq.s32.totalorder %s23, 0
      %p83 = por %p81, %p82
      %p84 = scmp.ne.s32.totalorder %s73, %s76
      %p85 = scmp.eq.s32.totalorder %s28, 1
      %p86 = por %p84, %p85
      %p87 = scmp.ne.s32.totalorder %s76, %s77
      %p88 = scmp.eq.s32.totalorder %s28, 0
      %p89 = por %p87, %p88
      %p90 = scmp.ne.s32.totalorder %s76, %s77
      %p91 = scmp.eq.s32.totalorder %s29, 1
      %p92 = por %p90, %p91
      %p94 = scmp.ne.s32.totalorder %s77, %s93
      %p95 = scmp.eq.s32.totalorder %s29, 0
      %p96 = por %p94, %p95
      %s97 = ssub.s32 %s31, %s38
      %p98 = scmp.eq.s32.totalorder %s97, 0
      %s100 = sadd.s32 %s99, 1
      %s101 = scalar_select %p98, %s99, %s100
      %p104 = pneg %p98
      %p105 = scmp.eq.s32.totalorder %s23, 1
      %p106 = por %p104, %p105
      %p107 = scmp.ne.s32.totalorder %s99, %s102
      %p108 = scmp.eq.s32.totalorder %s23, 0
      %p109 = por %p107, %p108
      %p110 = scmp.ne.s32.totalorder %s99, %s102
      %p111 = scmp.eq.s32.totalorder %s28, 1
      %p112 = por %p110, %p111
      %p113 = scmp.ne.s32.totalorder %s102, %s103
      %p114 = scmp.eq.s32.totalorder %s28, 0
      %p115 = por %p113, %p114
      %p116 = scmp.ne.s32.totalorder %s102, %s103
      %p117 = scmp.eq.s32.totalorder %s29, 1
      %p118 = por %p116, %p117
      %p120 = scmp.ne.s32.totalorder %s103, %s119
      %p121 = scmp.eq.s32.totalorder %s29, 0
      %p122 = por %p120, %p121
      %s123 = ssub.s32 %s31, %s38
      %p124 = scmp.eq.s32.totalorder %s123, 0
      %s126 = sadd.s32 %s125, 1
      %s127 = scalar_select %p124, %s125, %s126
      %p130 = pneg %p124
      %p131 = scmp.eq.s32.totalorder %s23, 1
      %p132 = por %p130, %p131
      %p133 = scmp.ne.s32.totalorder %s125, %s128
      %p134 = scmp.eq.s32.totalorder %s23, 0
      %p135 = por %p133, %p134
      %p136 = scmp.ne.s32.totalorder %s125, %s128
      %p137 = scmp.eq.s32.totalorder %s28, 1
      %p138 = por %p136, %p137
      %p139 = scmp.ne.s32.totalorder %s128, %s129
      %p140 = scmp.eq.s32.totalorder %s28, 0
      %p141 = por %p139, %p140
      %p142 = scmp.ne.s32.totalorder %s128, %s129
      %p143 = scmp.eq.s32.totalorder %s29, 1
      %p144 = por %p142, %p143
      %p146 = scmp.ne.s32.totalorder %s129, %s145
      %p147 = scmp.eq.s32.totalorder %s29, 0
      %p148 = por %p146, %p147
      %s150 = sadd.s32 %s149, 1
      %p153 = scmp.eq.s32.totalorder %s23, 1
      %p154 = scmp.ne.s32.totalorder %s149, %s151
      %p155 = scmp.eq.s32.totalorder %s23, 0
      %p156 = por %p154, %p155
      %p157 = scmp.ne.s32.totalorder %s149, %s151
      %p158 = scmp.eq.s32.totalorder %s28, 1
      %p159 = por %p157, %p158
      %p160 = scmp.ne.s32.totalorder %s151, %s152
      %p161 = scmp.eq.s32.totalorder %s28, 0
      %p162 = por %p160, %p161
      %p163 = scmp.ne.s32.totalorder %s151, %s152
      %p164 = scmp.eq.s32.totalorder %s29, 1
      %p165 = por %p163, %p164
      %p167 = scmp.ne.s32.totalorder %s152, %s166
      %p168 = scmp.eq.s32.totalorder %s29, 0
      %p169 = por %p167, %p168
      %s171 = sadd.s32 %s170, 1
      %p174 = scmp.eq.s32.totalorder %s23, 1
      %p175 = scmp.ne.s32.totalorder %s170, %s172
      %p176 = scmp.eq.s32.totalorder %s23, 0
      %p177 = por %p175, %p176
      %p178 = scmp.ne.s32.totalorder %s170, %s172
      %p179 = scmp.eq.s32.totalorder %s28, 1
      %p180 = por %p178, %p179
      %p181 = scmp.ne.s32.totalorder %s172, %s173
      %p182 = scmp.eq.s32.totalorder %s28, 0
      %p183 = por %p181, %p182
      %p184 = scmp.ne.s32.totalorder %s172, %s173
      %p185 = scmp.eq.s32.totalorder %s29, 1
      %p186 = por %p184, %p185
      %p188 = scmp.ne.s32.totalorder %s173, %s187
      %p189 = scmp.eq.s32.totalorder %s29, 0
      %p190 = por %p188, %p189
      %s191 = ssub.s32 %s30, %s42
      %s192 = ssub.s32 %s31, %s38
      %s193 = sor.u32 %s191, %s192
      %p194 = scmp.eq.s32.totalorder %s193, 0
      %s196 = sadd.s32 %s195, 1
      %s197 = scalar_select %p194, %s195, %s196
      %p200 = pneg %p194
      %p201 = scmp.eq.s32.totalorder %s23, 1
      %p202 = por %p200, %p201
      %p203 = scmp.ne.s32.totalorder %s195, %s198
      %p204 = scmp.eq.s32.totalorder %s23, 0
      %p205 = por %p203, %p204
      %p206 = scmp.ne.s32.totalorder %s195, %s198
      %p207 = scmp.eq.s32.totalorder %s28, 1
      %p208 = por %p206, %p207
      %p209 = scmp.ne.s32.totalorder %s198, %s199
      %p210 = scmp.eq.s32.totalorder %s28, 0
      %p211 = por %p209, %p210
      %p212 = scmp.ne.s32.totalorder %s198, %s199
      %p213 = scmp.eq.s32.totalorder %s29, 1
      %p214 = por %p212, %p213
      %p216 = scmp.ne.s32.totalorder %s199, %s215
      %p217 = scmp.eq.s32.totalorder %s29, 0
      %p218 = por %p216, %p217
      %p219 = scmp.le.s32.totalorder 1, %s23
      %p220 = scmp.lt.s32.totalorder %s23, 3
      %p221 = pnand %p219, %p220
      %p222 = pneg %p221
      // Predicated region
      $region9: #{mhsa_forward.4} parent=5 // pred_check
        _
      $region10: #{mhsa_forward.4} parent=5 // pred_check_branch
        %224 = sbr.rel (%p221) target = $region12
      $region11: #{mhsa_forward.4} parent=5 // pred_region
        %s225 = ssub.s32 %s23, 1
        // Predicated region
        $region13: #{mhsa_forward.4} parent=11 // pred_check
          %p226 = pneg %p115
        $region14: #{mhsa_forward.4} parent=11 // pred_check_branch
          %228 = sbr.rel (%p226) target = $region16
        $region15: #{mhsa_forward.4} parent=11 // pred_region
          %s229 = smul.u32 2, %s33
          %s231 = ssub.s32 256, 256
          %232 = vsyncadd [#allocation6], %s231
          %s233 = smul.addr %s229, 128
          %s234 = scalar_lea.hbm %s2, %s233
          %s235 = sshll.u32 [#allocation7], 4
          %s236 = int_to_ptr.vmem [resolvable:$true] %s235
          %241 = dma.hbm_to_vmem [thread:$0]  %s234, 256, %s236, [#allocation6], 128, 128, 8
        $region16: #{mhsa_forward.4} parent=11 // pred_fallthru
          _
        // Predicated region
        $region17: #{mhsa_forward.4} parent=11 // pred_check
          %p242 = pneg %p141
        $region18: #{mhsa_forward.4} parent=11 // pred_check_branch
          %244 = sbr.rel (%p242) target = $region20
        $region19: #{mhsa_forward.4} parent=11 // pred_region
          %s245 = smul.u32 2, %s33
          %s247 = ssub.s32 256, 256
          %248 = vsyncadd [#allocation9], %s247
          %s249 = smul.addr %s245, 128
          %s250 = scalar_lea.hbm %s3, %s249
          %s251 = sshll.u32 [#allocation8], 4
          %s252 = int_to_ptr.vmem [resolvable:$true] %s251
          %257 = dma.hbm_to_vmem [thread:$0]  %s250, 256, %s252, [#allocation9], 128, 128, 8
        $region20: #{mhsa_forward.4} parent=11 // pred_fallthru
          _
        // Predicated region
        $region21: #{mhsa_forward.4} parent=11 // pred_check
          %p258 = pneg %p162
        $region22: #{mhsa_forward.4} parent=11 // pred_check_branch
          %260 = sbr.rel (%p258) target = $region24
        $region23: #{mhsa_forward.4} parent=11 // pred_region
          %s262 = ssub.s32 256, 256
          %263 = vsyncadd [#allocation9], %s262
          %s264 = sshll.u32 [#allocation10], 4
          %s265 = int_to_ptr.vmem [resolvable:$true] %s264
          %270 = dma.hbm_to_vmem [thread:$0]  %s4, 256, %s265, [#allocation9], 128, 128, 8
        $region24: #{mhsa_forward.4} parent=11 // pred_fallthru
          _
        // Predicated region
        $region25: #{mhsa_forward.4} parent=11 // pred_check
          %p271 = pneg %p183
        $region26: #{mhsa_forward.4} parent=11 // pred_check_branch
          %273 = sbr.rel (%p271) target = $region28
        $region27: #{mhsa_forward.4} parent=11 // pred_region
          %s275 = ssub.s32 256, 256
          %276 = vsyncadd [#allocation12], %s275
          %s277 = sshll.u32 [#allocation11], 4
          %s278 = int_to_ptr.vmem [resolvable:$true] %s277
          %283 = dma.hbm_to_vmem [thread:$0]  %s5, 256, %s278, [#allocation12], 128, 128, 8
        $region28: #{mhsa_forward.4} parent=11 // pred_fallthru
          _
      $region12: #{mhsa_forward.4} parent=5 // pred_fallthru
        _
      %p284 = scmp.lt.s32.totalorder %s23, 2
      // Predicated region
      $region29: #{mhsa_forward.4} parent=5 // pred_check
        %p285 = pneg %p284
      $region30: #{mhsa_forward.4} parent=5 // pred_check_branch
        %287 = sbr.rel (%p285) target = $region32
      $region31: #{mhsa_forward.4} parent=5 // pred_region
        // Predicated region
        $region33: #{mhsa_forward.4} parent=31 // pred_check
          %p288 = pneg %p57
        $region34: #{mhsa_forward.4} parent=31 // pred_check_branch
          %290 = sbr.rel (%p288) target = $region36
        $region35: #{mhsa_forward.4} parent=31 // pred_region
          %s291 = sand.u32 %s47, 1
          %s292 = scalar_lea.sflag [#allocation3], %s291
          %s293 = sand.u32 %s47, 1
          %s294 = smul.addr %s293, 8
          %s295 = scalar_lea.vmem [#allocation2], %s294
          %s296 = smul.u32 2, %s31
          %s298 = ssub.s32 128, 128
          %299 = vsyncadd %s292, %s298
          %s300 = smul.addr %s30, 2
          %s301 = sadd.s32 %s296, %s300
          %s302 = smul.addr %s301, 64
          %s303 = scalar_lea.hbm %s0, %s302
          %s304 = sshll.u32 %s295, 4
          %s305 = int_to_ptr.vmem [resolvable:$true] %s304
          %310 = dma.hbm_to_vmem [thread:$0]  %s303, 128, %s305, %s292, 64, 64, 4
        $region36: #{mhsa_forward.4} parent=31 // pred_fallthru
          _
        // Predicated region
        $region37: #{mhsa_forward.4} parent=31 // pred_check
          %p311 = pneg %p83
        $region38: #{mhsa_forward.4} parent=31 // pred_check_branch
          %313 = sbr.rel (%p311) target = $region40
        $region39: #{mhsa_forward.4} parent=31 // pred_region
          %s314 = sand.u32 %s23, 1
          %s315 = scalar_lea.sflag [#allocation6], %s314
          %s316 = sand.u32 %s73, 1
          %s317 = smul.addr %s316, 8
          %s318 = scalar_lea.vmem [#allocation5], %s317
          %s320 = ssub.s32 128, 128
          %321 = vsyncadd %s315, %s320
          %s322 = smul.addr %s30, 2
          %s323 = smul.addr %s322, 64
          %s324 = scalar_lea.hbm %s1, %s323
          %s325 = sshll.u32 %s318, 4
          %s326 = int_to_ptr.vmem [resolvable:$true] %s325
          %331 = dma.hbm_to_vmem [thread:$0]  %s324, 128, %s326, %s315, 64, 64, 4
        $region40: #{mhsa_forward.4} parent=31 // pred_fallthru
          _
      $region32: #{mhsa_forward.4} parent=5 // pred_fallthru
        _
      %p332 = scmp.le.s32.totalorder 1, %s23
      %p333 = scmp.lt.s32.totalorder %s23, 3
      %p334 = pnand %p332, %p333
      %p335 = pneg %p334
      // Predicated region
      $region41: #{mhsa_forward.4} parent=5 // pred_check
        _
      $region42: #{mhsa_forward.4} parent=5 // pred_check_branch
        %337 = sbr.rel (%p334) target = $region44
      $region43: #{mhsa_forward.4} parent=5 // pred_region
        %s338 = ssub.s32 %s23, 1
        %s339 = sand.u32 %s50, 1
        %s340 = scalar_lea.sflag [#allocation3], %s339
        %s341 = sand.u32 %s50, 1
        %s342 = smul.addr %s341, 8
        %s343 = scalar_lea.vmem [#allocation2], %s342
        // Predicated region
        $region45: #{mhsa_forward.4} parent=43 // pred_check
          %p344 = pneg %p63
        $region46: #{mhsa_forward.4} parent=43 // pred_check_branch
          %346 = sbr.rel (%p344) target = $region48
        $region47: #{mhsa_forward.4} parent=43 // pred_region
          %347 = dma.done %s340, 128
        $region48: #{mhsa_forward.4} parent=43 // pred_fallthru
          _
        %s348 = sand.u32 %s28, 1
        %s349 = scalar_lea.sflag [#allocation6], %s348
        %s350 = sand.u32 %s76, 1
        %s351 = smul.addr %s350, 8
        %s352 = scalar_lea.vmem [#allocation5], %s351
        // Predicated region
        $region49: #{mhsa_forward.4} parent=43 // pred_check
          %p353 = pneg %p89
        $region50: #{mhsa_forward.4} parent=43 // pred_check_branch
          %355 = sbr.rel (%p353) target = $region52
        $region51: #{mhsa_forward.4} parent=43 // pred_region
          %356 = dma.done %s349, 128
        $region52: #{mhsa_forward.4} parent=43 // pred_fallthru
          _
        // Predicated region
        $region53: #{mhsa_forward.4} parent=43 // pred_check
          %p357 = pneg %p115
        $region54: #{mhsa_forward.4} parent=43 // pred_check_branch
          %359 = sbr.rel (%p357) target = $region56
        $region55: #{mhsa_forward.4} parent=43 // pred_region
          %360 = dma.done [#allocation6], 256
        $region56: #{mhsa_forward.4} parent=43 // pred_fallthru
          _
        // Predicated region
        $region57: #{mhsa_forward.4} parent=43 // pred_check
          %p361 = pneg %p141
        $region58: #{mhsa_forward.4} parent=43 // pred_check_branch
          %363 = sbr.rel (%p361) target = $region60
        $region59: #{mhsa_forward.4} parent=43 // pred_region
          %364 = dma.done [#allocation9], 256
        $region60: #{mhsa_forward.4} parent=43 // pred_fallthru
          _
        // Predicated region
        $region61: #{mhsa_forward.4} parent=43 // pred_check
          %p365 = pneg %p162
        $region62: #{mhsa_forward.4} parent=43 // pred_check_branch
          %367 = sbr.rel (%p365) target = $region64
        $region63: #{mhsa_forward.4} parent=43 // pred_region
          %368 = dma.done [#allocation9], 256
        $region64: #{mhsa_forward.4} parent=43 // pred_fallthru
          _
        // Predicated region
        $region65: #{mhsa_forward.4} parent=43 // pred_check
          %p369 = pneg %p183
        $region66: #{mhsa_forward.4} parent=43 // pred_check_branch
          %371 = sbr.rel (%p369) target = $region68
        $region67: #{mhsa_forward.4} parent=43 // pred_region
          %372 = dma.done [#allocation12], 256
        $region68: #{mhsa_forward.4} parent=43 // pred_fallthru
          _
        %s373 = sand.u32 %s50, 1
        %s374 = scalar_lea.sflag [#allocation3], %s373
        %s375 = sand.u32 %s50, 1
        %s376 = smul.addr %s375, 8
        %s377 = scalar_lea.vmem [#allocation2], %s376
        %p378 = pneg %p63
        %p379 = pneg %p60
        %s380 = sand.u32 %s28, 1
        %s381 = scalar_lea.sflag [#allocation6], %s380
        %s382 = sand.u32 %s76, 1
        %s383 = smul.addr %s382, 8
        %s384 = scalar_lea.vmem [#allocation5], %s383
        %p385 = pneg %p89
        %p386 = pneg %p86
        %p387 = pneg %p115
        %p388 = pneg %p112
        %p389 = pneg %p141
        %p390 = pneg %p138
        %p391 = pneg %p162
        %p392 = pneg %p159
        %p393 = pneg %p183
        %p394 = pneg %p180
        %p395 = pneg %p211
        %p396 = pneg %p208
        %s397 = sand.u32 %s198, 1
        %s398 = scalar_lea.sflag [#allocation4], %s397
        %s399 = sand.u32 %s198, 1
        %s400 = smul.addr %s399, 8
        %s401 = scalar_lea.vmem [#allocation13], %s400
        %s402 = smul.u32 2, %s33
        %s403 = smul.u32 2, %s33
        %s404 = smul.u32 2, %s33
        %s405 = smul.u32 2, %s33
        %v409 = vld [vmem:[%s343] sm:$0xf]
        %v410 = vld [vmem:[%s343 + $0x4] sm:$0xf]
        %v411 = vld [vmem:[#allocation7] sm:$0xff]
        %v412 = vld [vmem:[#allocation7 + $0x8] sm:$0xff]
        %v413 = vld [vmem:[#allocation8] sm:$0xff]
        %v414 = vld [vmem:[#allocation8 + $0x8] sm:$0xff]
        %v417 = vunpack.c.l.b16 %v409
        %v418 = vunpack.c.l.b16 %v410
        %v419 = vpack.c.b16 %v418, %v417
        %420 = vrot.lane.b32.xlu0 %v419, 126
        %v421 = vpop.permute.xlu0 %420
        %422 = vrot.lane.b32.xlu0 %v419, 30
        %v423 = vpop.permute.xlu0 %422
        %vm424 = vcmask 244736
        %v427 = vsel %vm424, %v421, %v423
        %429 = vrot.lane.b32.xlu0 %v419, 98
        %v430 = vpop.permute.xlu0 %429
        %431 = vrot.lane.b32.xlu0 %v419, 2
        %v432 = vpop.permute.xlu0 %431
        %vm433 = vcmask 15360
        %v436 = vsel %vm433, %v430, %v432
        %v438 = vlaneseq
        %v439 = vand.u32 %v438, 127
        %vm440 = vcmp.lt.s32.totalorder %v439, 0
        %v441 = vsub.s32 0, %v439
        %v442 = vsel %vm440, %v441, %v439
        %v443 = vshrl.u32 %v442, 2
        %v444 = vand.u32 %v442, 3
        %v445 = vsub.s32 0, %v444
        %v446 = vsel %vm440, %v445, %v444
        %vm447 = vcmp.ne.s32.totalorder %v446, 0
        %vm448 = vcmp.lt.s32.totalorder %v446, 0
        %vm449 = vmand %vm448, %vm447
        %v450 = vadd.s32 %v446, 4
        %v451 = vsel %vm449, %v450, %v446
        %vm452 = vcmp.lt.s32.totalorder %v451, 2
        %vm453 = vmpackc.low %vm452, %vm452
        %v454 = vsel %vm453, 65537, 0
        %v455 = vlaneseq
        %v456 = vshrl.u32 %v455, 7
        %v457 = vsub.s32 0, %v456
        %v458 = vrot.slane %v454, %v457
        %vm459 = vcmp.ne.s16.totalorder %v458, 0
        %v460 = vsel %vm459, %v427, %v436
        %v461 = vunpack.c.l.bf16 %v409
        %v462 = vunpack.c.l.bf16 %v410
        %v463 = vmul.f32 %v461, %v411
        %v464 = vmul.f32 %v462, %v412
        %v465 = vunpack.c.l.bf16 %v460
        %v466 = vunpack.c.h.bf16 %v460
        %v467 = vmul.f32 %v465, %v413
        %v468 = vmul.f32 %v466, %v414
        %v469 = vadd.f32 %v463, %v467
        %v470 = vadd.f32 %v464, %v468
        %v471 = vmul.f32 %v469, 0.35355338
        %v472 = vmul.f32 %v470, 0.35355338
        %v473 = vpack.c.bf16 %v472, %v471
        %v474 = vld [vmem:[%s352] sm:$0xf]
        %v475 = vld [vmem:[%s352 + $0x4] sm:$0xf]
        %v476 = vld [vmem:[#allocation10] sm:$0xff]
        %v477 = vld [vmem:[#allocation10 + $0x8] sm:$0xff]
        %v478 = vld [vmem:[#allocation11] sm:$0xff]
        %v479 = vld [vmem:[#allocation11 + $0x8] sm:$0xff]
        %v482 = vunpack.c.l.b16 %v474
        %v483 = vunpack.c.l.b16 %v475
        %v484 = vpack.c.b16 %v483, %v482
        %485 = vrot.lane.b32.xlu0 %v484, 94
        %v486 = vpop.permute.xlu0 %485
        %487 = vrot.lane.b32.xlu0 %v484, 126
        %v488 = vpop.permute.xlu0 %487
        %v491 = vsel %vm424, %v486, %v488
        %493 = vrot.lane.b32.xlu0 %v484, 66
        %v494 = vpop.permute.xlu0 %493
        %495 = vrot.lane.b32.xlu0 %v484, 98
        %v496 = vpop.permute.xlu0 %495
        %v499 = vsel %vm433, %v494, %v496
        %v501 = vsel %vm459, %v491, %v499
        %v502 = vunpack.c.l.bf16 %v474
        %v503 = vunpack.c.l.bf16 %v475
        %506 = vrot.lane.b32.xlu0 %v476, 32
        %v507 = vpop.permute.xlu0 %506
        %508 = vrot.lane.b32.xlu0 %v477, 32
        %v509 = vpop.permute.xlu0 %508
        %v512 = vmul.f32 %v502, %v507
        %v513 = vmul.f32 %v503, %v509
        %v514 = vunpack.c.l.bf16 %v501
        %v515 = vunpack.c.h.bf16 %v501
        %v516 = vmul.f32 %v514, %v478
        %v517 = vmul.f32 %v515, %v479
        %520 = vrot.lane.b32.xlu0 %v516, 32
        %v521 = vpop.permute.xlu0 %520
        %522 = vrot.lane.b32.xlu0 %v517, 32
        %v523 = vpop.permute.xlu0 %522
        %v526 = vadd.f32 %v512, %v521
        %v527 = vadd.f32 %v513, %v523
        %v528 = vpack.c.bf16 %v527, %v526
        %530 = vrot.lane.b32.xlu0 %v528, 96
        %v531 = vpop.permute.xlu0 %530
        %vm532 = vcmask 64512
        %v534 = vsel %vm532, %v473, 0
        %v537 = vsel %vm532, %v531, 0
        %539 = vmatprep.subr.bf16.mxu0 0
        %540 = vmatpush1.bf16.xpose.msra.mxu0 %v537
        %541 = vmatprep.subr.bf16.mxu0 0
        %542 = vmatpush1.bf16.xpose.msra.mxu0 0
        %543 = vmatprep.subr.bf16.mxu0 0
        %544 = vmatpush1.bf16.xpose.msra.mxu0 0
        %545 = vmatprep.subr.bf16.mxu0 0
        %546 = vmatpush1.bf16.xpose.msra.mxu0 0
        %547 = vmatprep.subr.bf16.mxu0 0
        %548 = vmatpush1.bf16.xpose.msra.mxu0 0
        %549 = vmatprep.subr.bf16.mxu0 0
        %550 = vmatpush1.bf16.xpose.msra.mxu0 0
        %551 = vmatprep.subr.bf16.mxu0 0
        %552 = vmatpush1.bf16.xpose.msra.mxu0 0
        %553 = vmatprep.subr.bf16.mxu0 0
        %554 = vmatpush1.bf16.xpose.msra.mxu0 0
        %555 = vmatprep.subr.bf16.mxu0 0
        %556 = vmatpush1.bf16.xpose.msra.mxu0 0
        %557 = vmatprep.subr.bf16.mxu0 0
        %558 = vmatpush1.bf16.xpose.msra.mxu0 0
        %559 = vmatprep.subr.bf16.mxu0 0
        %560 = vmatpush1.bf16.xpose.msra.mxu0 0
        %561 = vmatprep.subr.bf16.mxu0 0
        %562 = vmatpush1.bf16.xpose.msra.mxu0 0
        %563 = vmatprep.subr.bf16.mxu0 0
        %564 = vmatpush1.bf16.xpose.msra.mxu0 0
        %565 = vmatprep.subr.bf16.mxu0 0
        %566 = vmatpush1.bf16.xpose.msra.mxu0 0
        %567 = vmatprep.subr.bf16.mxu0 0
        %568 = vmatpush1.bf16.xpose.msra.mxu0 0
        %569 = vmatprep.subr.bf16.mxu0 0
        %570 = vmatpush1.bf16.xpose.msra.mxu0 0
        %571 = vmatprep.mubr.bf16.mxu0 0
        %572 = vmatmul.mubr.bf16.gmra.mrb[0].mxu0 %v534
        %v573 = vpop.f32.mrb[0].mxu0
        %v574 = vadd.f32 0.0, %v573
        %v575 = vpop.f32.mrb[0].mxu0
        %v576 = vpop.f32.mrb[0].mxu0
        %v577 = vadd.f32 0.0, %v576
        %v578 = vpop.f32.mrb[0].mxu0
        %579 = vdwg.mxu0
        %vm580 = vcmask 130048
        %v581 = vsel %vm580, %v574, -inf
        %582 = vmax.xlane.f32.xlu0 %v581
        %v583 = vpop.xlane.xlu0 %582
        %v584 = vsel %vm580, %v577, -inf
        %585 = vmax.xlane.f32.xlu0 %v584
        %v586 = vpop.xlane.xlu0 %585
        %v587 = vsub.f32 %v574, %v583
        %v588 = vsub.f32 %v577, %v586
        %v589 = vmul.f32 %v587, 1.442695
        %v590 = vpow.pop %v589
        %v591 = vmul.f32 %v588, 1.442695
        %v592 = vpow.pop %v591
        %v593 = vsel %vm580, %v590, 0.0
        %594 = vadd.xlane.f32.xlu0 %v593
        %v595 = vpop.xlane.xlu0 %594
        %v596 = vsel %vm580, %v592, 0.0
        %597 = vadd.xlane.f32.xlu0 %v596
        %v598 = vpop.xlane.xlu0 %597
        %v599 = vrcp.pop %v595
        %v600 = vrcp.pop %v598
        %v601 = vmul.f32 %v590, %v599
        %v602 = vmul.f32 %v592, %v600
        %v603 = vpack.c.bf16 %v602, %v601
        %604 = vrot.lane.b32.xlu0 %v484, 64
        %v605 = vpop.permute.xlu0 %604
        %v608 = vsel %vm580, %v603, 0
        %610 = vmatprep.subr.bf16.mxu0 0
        %611 = vmatpush1.bf16.msra.mxu0 %v605
        %612 = vmatprep.subr.bf16.mxu0 0
        %613 = vmatpush1.bf16.msra.mxu0 0
        %614 = vmatprep.subr.bf16.mxu0 0
        %615 = vmatpush1.bf16.msra.mxu0 0
        %616 = vmatprep.subr.bf16.mxu0 0
        %617 = vmatpush1.bf16.msra.mxu0 0
        %618 = vmatprep.subr.bf16.mxu0 0
        %619 = vmatpush1.bf16.msra.mxu0 0
        %620 = vmatprep.subr.bf16.mxu0 0
        %621 = vmatpush1.bf16.msra.mxu0 0
        %622 = vmatprep.subr.bf16.mxu0 0
        %623 = vmatpush1.bf16.msra.mxu0 0
        %624 = vmatprep.subr.bf16.mxu0 0
        %625 = vmatpush1.bf16.msra.mxu0 0
        %626 = vmatprep.subr.bf16.mxu0 0
        %627 = vmatpush1.bf16.msra.mxu0 0
        %628 = vmatprep.subr.bf16.mxu0 0
        %629 = vmatpush1.bf16.msra.mxu0 0
        %630 = vmatprep.subr.bf16.mxu0 0
        %631 = vmatpush1.bf16.msra.mxu0 0
        %632 = vmatprep.subr.bf16.mxu0 0
        %633 = vmatpush1.bf16.msra.mxu0 0
        %634 = vmatprep.subr.bf16.mxu0 0
        %635 = vmatpush1.bf16.msra.mxu0 0
        %636 = vmatprep.subr.bf16.mxu0 0
        %637 = vmatpush1.bf16.msra.mxu0 0
        %638 = vmatprep.subr.bf16.mxu0 0
        %639 = vmatpush1.bf16.msra.mxu0 0
        %640 = vmatprep.subr.bf16.mxu0 0
        %641 = vmatpush1.bf16.msra.mxu0 0
        %642 = vmatprep.mubr.bf16.mxu0 0
        %643 = vmatmul.mubr.bf16.gmra.mrb[0].mxu0 %v608
        %v644 = vpop.f32.mrb[0].mxu0
        %v645 = vadd.f32 0.0, %v644
        %v646 = vpop.f32.mrb[0].mxu0
        %v647 = vpop.f32.mrb[0].mxu0
        %v648 = vadd.f32 0.0, %v647
        %v649 = vpop.f32.mrb[0].mxu0
        %650 = vdwg.mxu0
        %v651 = vpack.c.bf16 %v648, %v645
        %v653 = vunpack.c.l.b16 %v651
        %v654 = vunpack.c.h.b16 %v651
        %v655 = vpack.c.b16 %v653, %v653
        %v656 = vpack.c.b16 %v654, %v654
        %vm659 = vcmask 60416
        %660 = vst.msk [vmem:[%s401] sm:$0xf] %vm659, %v655
        %661 = vst.msk [vmem:[%s401 + $0x4] sm:$0xf] %vm659, %v656
        %663 = vrot.lane.b32.xlu0 %v473, 120
        %v664 = vpop.permute.xlu0 %663
        %665 = vrot.lane.b32.xlu0 %v528, 88
        %v666 = vpop.permute.xlu0 %665
        %v668 = vsel %vm532, %v664, 0
        %v671 = vsel %vm532, %v666, 0
        %673 = vmatprep.subr.bf16.mxu0 0
        %674 = vmatpush1.bf16.xpose.msra.mxu0 %v671
        %675 = vmatprep.subr.bf16.mxu0 0
        %676 = vmatpush1.bf16.xpose.msra.mxu0 0
        %677 = vmatprep.subr.bf16.mxu0 0
        %678 = vmatpush1.bf16.xpose.msra.mxu0 0
        %679 = vmatprep.subr.bf16.mxu0 0
        %680 = vmatpush1.bf16.xpose.msra.mxu0 0
        %681 = vmatprep.subr.bf16.mxu0 0
        %682 = vmatpush1.bf16.xpose.msra.mxu0 0
        %683 = vmatprep.subr.bf16.mxu0 0
        %684 = vmatpush1.bf16.xpose.msra.mxu0 0
        %685 = vmatprep.subr.bf16.mxu0 0
        %686 = vmatpush1.bf16.xpose.msra.mxu0 0
        %687 = vmatprep.subr.bf16.mxu0 0
        %688 = vmatpush1.bf16.xpose.msra.mxu0 0
        %689 = vmatprep.subr.bf16.mxu0 0
        %690 = vmatpush1.bf16.xpose.msra.mxu0 0
        %691 = vmatprep.subr.bf16.mxu0 0
        %692 = vmatpush1.bf16.xpose.msra.mxu0 0
        %693 = vmatprep.subr.bf16.mxu0 0
        %694 = vmatpush1.bf16.xpose.msra.mxu0 0
        %695 = vmatprep.subr.bf16.mxu0 0
        %696 = vmatpush1.bf16.xpose.msra.mxu0 0
        %697 = vmatprep.subr.bf16.mxu0 0
        %698 = vmatpush1.bf16.xpose.msra.mxu0 0
        %699 = vmatprep.subr.bf16.mxu0 0
        %700 = vmatpush1.bf16.xpose.msra.mxu0 0
        %701 = vmatprep.subr.bf16.mxu0 0
        %702 = vmatpush1.bf16.xpose.msra.mxu0 0
        %703 = vmatprep.subr.bf16.mxu0 0
        %704 = vmatpush1.bf16.xpose.msra.mxu0 0
        %705 = vmatprep.mubr.bf16.mxu0 0
        %706 = vmatmul.mubr.bf16.gmra.mrb[0].mxu0 %v668
        %v707 = vpop.f32.mrb[0].mxu0
        %v708 = vadd.f32 0.0, %v707
        %v709 = vpop.f32.mrb[0].mxu0
        %v710 = vpop.f32.mrb[0].mxu0
        %v711 = vadd.f32 0.0, %v710
        %v712 = vpop.f32.mrb[0].mxu0
        %713 = vdwg.mxu0
        %v714 = vsel %vm580, %v708, -inf
        %715 = vmax.xlane.f32.xlu0 %v714
        %v716 = vpop.xlane.xlu0 %715
        %v717 = vsel %vm580, %v711, -inf
        %718 = vmax.xlane.f32.xlu0 %v717
        %v719 = vpop.xlane.xlu0 %718
        %v720 = vsub.f32 %v708, %v716
        %v721 = vsub.f32 %v711, %v719
        %v722 = vmul.f32 %v720, 1.442695
        %v723 = vpow.pop %v722
        %v724 = vmul.f32 %v721, 1.442695
        %v725 = vpow.pop %v724
        %v726 = vsel %vm580, %v723, 0.0
        %727 = vadd.xlane.f32.xlu0 %v726
        %v728 = vpop.xlane.xlu0 %727
        %v729 = vsel %vm580, %v725, 0.0
        %730 = vadd.xlane.f32.xlu0 %v729
        %v731 = vpop.xlane.xlu0 %730
        %v732 = vrcp.pop %v728
        %v733 = vrcp.pop %v731
        %v734 = vmul.f32 %v723, %v732
        %v735 = vmul.f32 %v725, %v733
        %v736 = vpack.c.bf16 %v735, %v734
        %v737 = vld [vmem:[%s352] sm:$0xf]
        %v738 = vld [vmem:[%s352 + $0x4] sm:$0xf]
        %v741 = vunpack.c.l.b16 %v737
        %v742 = vunpack.c.l.b16 %v738
        %v743 = vpack.c.b16 %v742, %v741
        %744 = vrot.lane.b32.xlu0 %v743, 56
        %v745 = vpop.permute.xlu0 %744
        %v748 = vsel %vm580, %v736, 0
        %750 = vmatprep.subr.bf16.mxu0 0
        %751 = vmatpush1.bf16.msra.mxu0 %v745
        %752 = vmatprep.subr.bf16.mxu0 0
        %753 = vmatpush1.bf16.msra.mxu0 0
        %754 = vmatprep.subr.bf16.mxu0 0
        %755 = vmatpush1.bf16.msra.mxu0 0
        %756 = vmatprep.subr.bf16.mxu0 0
        %757 = vmatpush1.bf16.msra.mxu0 0
        %758 = vmatprep.subr.bf16.mxu0 0
        %759 = vmatpush1.bf16.msra.mxu0 0
        %760 = vmatprep.subr.bf16.mxu0 0
        %761 = vmatpush1.bf16.msra.mxu0 0
        %762 = vmatprep.subr.bf16.mxu0 0
        %763 = vmatpush1.bf16.msra.mxu0 0
        %764 = vmatprep.subr.bf16.mxu0 0
        %765 = vmatpush1.bf16.msra.mxu0 0
        %766 = vmatprep.subr.bf16.mxu0 0
        %767 = vmatpush1.bf16.msra.mxu0 0
        %768 = vmatprep.subr.bf16.mxu0 0
        %769 = vmatpush1.bf16.msra.mxu0 0
        %770 = vmatprep.subr.bf16.mxu0 0
        %771 = vmatpush1.bf16.msra.mxu0 0
        %772 = vmatprep.subr.bf16.mxu0 0
        %773 = vmatpush1.bf16.msra.mxu0 0
        %774 = vmatprep.subr.bf16.mxu0 0
        %775 = vmatpush1.bf16.msra.mxu0 0
        %776 = vmatprep.subr.bf16.mxu0 0
        %777 = vmatpush1.bf16.msra.mxu0 0
        %778 = vmatprep.subr.bf16.mxu0 0
        %779 = vmatpush1.bf16.msra.mxu0 0
        %780 = vmatprep.subr.bf16.mxu0 0
        %781 = vmatpush1.bf16.msra.mxu0 0
        %782 = vmatprep.mubr.bf16.mxu0 0
        %783 = vmatmul.mubr.bf16.gmra.mrb[0].mxu0 %v748
        %v784 = vpop.f32.mrb[0].mxu0
        %v785 = vadd.f32 0.0, %v784
        %v786 = vpop.f32.mrb[0].mxu0
        %v787 = vpop.f32.mrb[0].mxu0
        %v788 = vadd.f32 0.0, %v787
        %v789 = vpop.f32.mrb[0].mxu0
        %790 = vdwg.mxu0
        %v791 = vpack.c.bf16 %v788, %v785
        %v793 = vunpack.c.l.b16 %v791
        %v794 = vunpack.c.h.b16 %v791
        %v795 = vpack.c.b16 %v793, %v793
        %v796 = vpack.c.b16 %v794, %v794
        %797 = vrot.lane.b32.xlu0 %v795, 8
        %v798 = vpop.permute.xlu0 %797
        %799 = vrot.lane.b32.xlu0 %v796, 8
        %v800 = vpop.permute.xlu0 %799
        %vm803 = vcmask 126016
        %804 = vst.msk [vmem:[%s401] sm:$0xf] %vm803, %v798
        %805 = vst.msk [vmem:[%s401 + $0x4] sm:$0xf] %vm803, %v800
        %806 = vrot.lane.b32.xlu0 %v473, 112
        %v807 = vpop.permute.xlu0 %806
        %808 = vrot.lane.b32.xlu0 %v528, 80
        %v809 = vpop.permute.xlu0 %808
        %v811 = vsel %vm532, %v807, 0
        %v814 = vsel %vm532, %v809, 0
        %816 = vmatprep.subr.bf16.mxu0 0
        %817 = vmatpush1.bf16.xpose.msra.mxu0 %v814
        %818 = vmatprep.subr.bf16.mxu0 0
        %819 = vmatpush1.bf16.xpose.msra.mxu0 0
        %820 = vmatprep.subr.bf16.mxu0 0
        %821 = vmatpush1.bf16.xpose.msra.mxu0 0
        %822 = vmatprep.subr.bf16.mxu0 0
        %823 = vmatpush1.bf16.xpose.msra.mxu0 0
        %824 = vmatprep.subr.bf16.mxu0 0
        %825 = vmatpush1.bf16.xpose.msra.mxu0 0
        %826 = vmatprep.subr.bf16.mxu0 0
        %827 = vmatpush1.bf16.xpose.msra.mxu0 0
        %828 = vmatprep.subr.bf16.mxu0 0
        %829 = vmatpush1.bf16.xpose.msra.mxu0 0
        %830 = vmatprep.subr.bf16.mxu0 0
        %831 = vmatpush1.bf16.xpose.msra.mxu0 0
        %832 = vmatprep.subr.bf16.mxu0 0
        %833 = vmatpush1.bf16.xpose.msra.mxu0 0
        %834 = vmatprep.subr.bf16.mxu0 0
        %835 = vmatpush1.bf16.xpose.msra.mxu0 0
        %836 = vmatprep.subr.bf16.mxu0 0
        %837 = vmatpush1.bf16.xpose.msra.mxu0 0
        %838 = vmatprep.subr.bf16.mxu0 0
        %839 = vmatpush1.bf16.xpose.msra.mxu0 0
        %840 = vmatprep.subr.bf16.mxu0 0
        %841 = vmatpush1.bf16.xpose.msra.mxu0 0
        %842 = vmatprep.subr.bf16.mxu0 0
        %843 = vmatpush1.bf16.xpose.msra.mxu0 0
        %844 = vmatprep.subr.bf16.mxu0 0
        %845 = vmatpush1.bf16.xpose.msra.mxu0 0
        %846 = vmatprep.subr.bf16.mxu0 0
        %847 = vmatpush1.bf16.xpose.msra.mxu0 0
        %848 = vmatprep.mubr.bf16.mxu0 0
        %849 = vmatmul.mubr.bf16.gmra.mrb[0].mxu0 %v811
        %v850 = vpop.f32.mrb[0].mxu0
        %v851 = vadd.f32 0.0, %v850
        %v852 = vpop.f32.mrb[0].mxu0
        %v853 = vpop.f32.mrb[0].mxu0
        %v854 = vadd.f32 0.0, %v853
        %v855 = vpop.f32.mrb[0].mxu0
        %856 = vdwg.mxu0
        %v857 = vsel %vm580, %v851, -inf
        %858 = vmax.xlane.f32.xlu0 %v857
        %v859 = vpop.xlane.xlu0 %858
        %v860 = vsel %vm580, %v854, -inf
        %861 = vmax.xlane.f32.xlu0 %v860
        %v862 = vpop.xlane.xlu0 %861
        %v863 = vsub.f32 %v851, %v859
        %v864 = vsub.f32 %v854, %v862
        %v865 = vmul.f32 %v863, 1.442695
        %v866 = vpow.pop %v865
        %v867 = vmul.f32 %v864, 1.442695
        %v868 = vpow.pop %v867
        %v869 = vsel %vm580, %v866, 0.0
        %870 = vadd.xlane.f32.xlu0 %v869
        %v871 = vpop.xlane.xlu0 %870
        %v872 = vsel %vm580, %v868, 0.0
        %873 = vadd.xlane.f32.xlu0 %v872
        %v874 = vpop.xlane.xlu0 %873
        %v875 = vrcp.pop %v871
        %v876 = vrcp.pop %v874
        %v877 = vmul.f32 %v866, %v875
        %v878 = vmul.f32 %v868, %v876
        %v879 = vpack.c.bf16 %v878, %v877
        %v880 = vld [vmem:[%s352] sm:$0xf]
        %v881 = vld [vmem:[%s352 + $0x4] sm:$0xf]
        %v884 = vunpack.c.l.b16 %v880
        %v885 = vunpack.c.l.b16 %v881
        %v886 = vpack.c.b16 %v885, %v884
        %887 = vrot.lane.b32.xlu0 %v886, 48
        %v888 = vpop.permute.xlu0 %887
        %v891 = vsel %vm580, %v879, 0
        %893 = vmatprep.subr.bf16.mxu0 0
        %894 = vmatpush1.bf16.msra.mxu0 %v888
        %895 = vmatprep.subr.bf16.mxu0 0
        %896 = vmatpush1.bf16.msra.mxu0 0
        %897 = vmatprep.subr.bf16.mxu0 0
        %898 = vmatpush1.bf16.msra.mxu0 0
        %899 = vmatprep.subr.bf16.mxu0 0
        %900 = vmatpush1.bf16.msra.mxu0 0
        %901 = vmatprep.subr.bf16.mxu0 0
        %902 = vmatpush1.bf16.msra.mxu0 0
        %903 = vmatprep.subr.bf16.mxu0 0
        %904 = vmatpush1.bf16.msra.mxu0 0
        %905 = vmatprep.subr.bf16.mxu0 0
        %906 = vmatpush1.bf16.msra.mxu0 0
        %907 = vmatprep.subr.bf16.mxu0 0
        %908 = vmatpush1.bf16.msra.mxu0 0
        %909 = vmatprep.subr.bf16.mxu0 0
        %910 = vmatpush1.bf16.msra.mxu0 0
        %911 = vmatprep.subr.bf16.mxu0 0
        %912 = vmatpush1.bf16.msra.mxu0 0
        %913 = vmatprep.subr.bf16.mxu0 0
        %914 = vmatpush1.bf16.msra.mxu0 0
        %915 = vmatprep.subr.bf16.mxu0 0
        %916 = vmatpush1.bf16.msra.mxu0 0
        %917 = vmatprep.subr.bf16.mxu0 0
        %918 = vmatpush1.bf16.msra.mxu0 0
        %919 = vmatprep.subr.bf16.mxu0 0
        %920 = vmatpush1.bf16.msra.mxu0 0
        %921 = vmatprep.subr.bf16.mxu0 0
        %922 = vmatpush1.bf16.msra.mxu0 0
        %923 = vmatprep.subr.bf16.mxu0 0
        %924 = vmatpush1.bf16.msra.mxu0 0
        %925 = vmatprep.mubr.bf16.mxu0 0
        %926 = vmatmul.mubr.bf16.gmra.mrb[0].mxu0 %v891
        %v927 = vpop.f32.mrb[0].mxu0
        %v928 = vadd.f32 0.0, %v927
        %v929 = vpop.f32.mrb[0].mxu0
        %v930 = vpop.f32.mrb[0].mxu0
        %v931 = vadd.f32 0.0, %v930
        %v932 = vpop.f32.mrb[0].mxu0
        %933 = vdwg.mxu0
        %v934 = vpack.c.bf16 %v931, %v928
        %v936 = vunpack.c.l.b16 %v934
        %v937 = vunpack.c.h.b16 %v934
        %v938 = vpack.c.b16 %v936, %v936
        %v939 = vpack.c.b16 %v937, %v937
        %940 = vrot.lane.b32.xlu0 %v938, 16
        %v941 = vpop.permute.xlu0 %940
        %942 = vrot.lane.b32.xlu0 %v939, 16
        %v943 = vpop.permute.xlu0 %942
        %vm946 = vcmask 191616
        %947 = vst.msk [vmem:[%s401] sm:$0xf] %vm946, %v941
        %948 = vst.msk [vmem:[%s401 + $0x4] sm:$0xf] %vm946, %v943
        %949 = vrot.lane.b32.xlu0 %v473, 104
        %v950 = vpop.permute.xlu0 %949
        %951 = vrot.lane.b32.xlu0 %v528, 72
        %v952 = vpop.permute.xlu0 %951
        %v954 = vsel %vm532, %v950, 0
        %v957 = vsel %vm532, %v952, 0
        %959 = vmatprep.subr.bf16.mxu0 0
        %960 = vmatpush1.bf16.xpose.msra.mxu0 %v957
        %961 = vmatprep.subr.bf16.mxu0 0
        %962 = vmatpush1.bf16.xpose.msra.mxu0 0
        %963 = vmatprep.subr.bf16.mxu0 0
        %964 = vmatpush1.bf16.xpose.msra.mxu0 0
        %965 = vmatprep.subr.bf16.mxu0 0
        %966 = vmatpush1.bf16.xpose.msra.mxu0 0
        %967 = vmatprep.subr.bf16.mxu0 0
        %968 = vmatpush1.bf16.xpose.msra.mxu0 0
        %969 = vmatprep.subr.bf16.mxu0 0
        %970 = vmatpush1.bf16.xpose.msra.mxu0 0
        %971 = vmatprep.subr.bf16.mxu0 0
        %972 = vmatpush1.bf16.xpose.msra.mxu0 0
        %973 = vmatprep.subr.bf16.mxu0 0
        %974 = vmatpush1.bf16.xpose.msra.mxu0 0
        %975 = vmatprep.subr.bf16.mxu0 0
        %976 = vmatpush1.bf16.xpose.msra.mxu0 0
        %977 = vmatprep.subr.bf16.mxu0 0
        %978 = vmatpush1.bf16.xpose.msra.mxu0 0
        %979 = vmatprep.subr.bf16.mxu0 0
        %980 = vmatpush1.bf16.xpose.msra.mxu0 0
        %981 = vmatprep.subr.bf16.mxu0 0
        %982 = vmatpush1.bf16.xpose.msra.mxu0 0
        %983 = vmatprep.subr.bf16.mxu0 0
        %984 = vmatpush1.bf16.xpose.msra.mxu0 0
        %985 = vmatprep.subr.bf16.mxu0 0
        %986 = vmatpush1.bf16.xpose.msra.mxu0 0
        %987 = vmatprep.subr.bf16.mxu0 0
        %988 = vmatpush1.bf16.xpose.msra.mxu0 0
        %989 = vmatprep.subr.bf16.mxu0 0
        %990 = vmatpush1.bf16.xpose.msra.mxu0 0
        %991 = vmatprep.mubr.bf16.mxu0 0
        %992 = vmatmul.mubr.bf16.gmra.mrb[0].mxu0 %v954
        %v993 = vpop.f32.mrb[0].mxu0
        %v994 = vadd.f32 0.0, %v993
        %v995 = vpop.f32.mrb[0].mxu0
        %v996 = vpop.f32.mrb[0].mxu0
        %v997 = vadd.f32 0.0, %v996
        %v998 = vpop.f32.mrb[0].mxu0
        %999 = vdwg.mxu0
        %v1000 = vsel %vm580, %v994, -inf
        %1001 = vmax.xlane.f32.xlu0 %v1000
        %v1002 = vpop.xlane.xlu0 %1001
        %v1003 = vsel %vm580, %v997, -inf
        %1004 = vmax.xlane.f32.xlu0 %v1003
        %v1005 = vpop.xlane.xlu0 %1004
        %v1006 = vsub.f32 %v994, %v1002
        %v1007 = vsub.f32 %v997, %v1005
        %v1008 = vmul.f32 %v1006, 1.442695
        %v1009 = vpow.pop %v1008
        %v1010 = vmul.f32 %v1007, 1.442695
        %v1011 = vpow.pop %v1010
        %v1012 = vsel %vm580, %v1009, 0.0
        %1013 = vadd.xlane.f32.xlu0 %v1012
        %v1014 = vpop.xlane.xlu0 %1013
        %v1015 = vsel %vm580, %v1011, 0.0
        %1016 = vadd.xlane.f32.xlu0 %v1015
        %v1017 = vpop.xlane.xlu0 %1016
        %v1018 = vrcp.pop %v1014
        %v1019 = vrcp.pop %v1017
        %v1020 = vmul.f32 %v1009, %v1018
        %v1021 = vmul.f32 %v1011, %v1019
        %v1022 = vpack.c.bf16 %v1021, %v1020
        %v1023 = vld [vmem:[%s352] sm:$0xf]
        %v1024 = vld [vmem:[%s352 + $0x4] sm:$0xf]
        %v1027 = vunpack.c.l.b16 %v1023
        %v1028 = vunpack.c.l.b16 %v1024
        %v1029 = vpack.c.b16 %v1028, %v1027
        %1030 = vrot.lane.b32.xlu0 %v1029, 40
        %v1031 = vpop.permute.xlu0 %1030
        %v1034 = vsel %vm580, %v1022, 0
        %1036 = vmatprep.subr.bf16.mxu0 0
        %1037 = vmatpush1.bf16.msra.mxu0 %v1031
        %1038 = vmatprep.subr.bf16.mxu0 0
        %1039 = vmatpush1.bf16.msra.mxu0 0
        %1040 = vmatprep.subr.bf16.mxu0 0
        %1041 = vmatpush1.bf16.msra.mxu0 0
        %1042 = vmatprep.subr.bf16.mxu0 0
        %1043 = vmatpush1.bf16.msra.mxu0 0
        %1044 = vmatprep.subr.bf16.mxu0 0
        %1045 = vmatpush1.bf16.msra.mxu0 0
        %1046 = vmatprep.subr.bf16.mxu0 0
        %1047 = vmatpush1.bf16.msra.mxu0 0
        %1048 = vmatprep.subr.bf16.mxu0 0
        %1049 = vmatpush1.bf16.msra.mxu0 0
        %1050 = vmatprep.subr.bf16.mxu0 0
        %1051 = vmatpush1.bf16.msra.mxu0 0
        %1052 = vmatprep.subr.bf16.mxu0 0
        %1053 = vmatpush1.bf16.msra.mxu0 0
        %1054 = vmatprep.subr.bf16.mxu0 0
        %1055 = vmatpush1.bf16.msra.mxu0 0
        %1056 = vmatprep.subr.bf16.mxu0 0
        %1057 = vmatpush1.bf16.msra.mxu0 0
        %1058 = vmatprep.subr.bf16.mxu0 0
        %1059 = vmatpush1.bf16.msra.mxu0 0
        %1060 = vmatprep.subr.bf16.mxu0 0
        %1061 = vmatpush1.bf16.msra.mxu0 0
        %1062 = vmatprep.subr.bf16.mxu0 0
        %1063 = vmatpush1.bf16.msra.mxu0 0
        %1064 = vmatprep.subr.bf16.mxu0 0
        %1065 = vmatpush1.bf16.msra.mxu0 0
        %1066 = vmatprep.subr.bf16.mxu0 0
        %1067 = vmatpush1.bf16.msra.mxu0 0
        %1068 = vmatprep.mubr.bf16.mxu0 0
        %1069 = vmatmul.mubr.bf16.gmra.mrb[0].mxu0 %v1034
        %v1070 = vpop.f32.mrb[0].mxu0
        %v1071 = vadd.f32 0.0, %v1070
        %v1072 = vpop.f32.mrb[0].mxu0
        %v1073 = vpop.f32.mrb[0].mxu0
        %v1074 = vadd.f32 0.0, %v1073
        %v1075 = vpop.f32.mrb[0].mxu0
        %1076 = vdwg.mxu0
        %v1077 = vpack.c.bf16 %v1074, %v1071
        %v1079 = vunpack.c.l.b16 %v1077
        %v1080 = vunpack.c.h.b16 %v1077
        %v1081 = vpack.c.b16 %v1079, %v1079
        %v1082 = vpack.c.b16 %v1080, %v1080
        %1083 = vrot.lane.b32.xlu0 %v1081, 24
        %v1084 = vpop.permute.xlu0 %1083
        %1085 = vrot.lane.b32.xlu0 %v1082, 24
        %v1086 = vpop.permute.xlu0 %1085
        %vm1089 = vcmask 257216
        %1090 = vst.msk [vmem:[%s401] sm:$0xf] %vm1089, %v1084
        %1091 = vst.msk [vmem:[%s401 + $0x4] sm:$0xf] %vm1089, %v1086
        %s1092 = sand.u32 %s198, 1
        %s1093 = scalar_lea.sflag [#allocation4], %s1092
        %s1094 = sand.u32 %s198, 1
        %s1095 = smul.addr %s1094, 8
        %s1096 = scalar_lea.vmem [#allocation13], %s1095
        // Predicated region
        $region69: #{mhsa_forward.4} parent=43 // pred_check
          %p1097 = pneg %p208
        $region70: #{mhsa_forward.4} parent=43 // pred_check_branch
          %1099 = sbr.rel (%p1097) target = $region72
        $region71: #{mhsa_forward.4} parent=43 // pred_region
          %s1100 = smul.u32 2, %s33
          %s1102 = ssub.s32 128, 128
          %1103 = vsyncadd %s1093, %s1102
          %s1104 = smul.addr %s32, 2
          %s1105 = sadd.s32 %s1100, %s1104
          %s1106 = smul.addr %s1105, 64
          %s1107 = scalar_lea.hbm %s6, %s1106
          %s1108 = sshll.u32 %s1096, 4
          %s1109 = int_to_ptr.vmem [resolvable:$true] %s1108
          %1114 = dma.vmem_to_hbm [thread:$0]  %s1109, 128, %s1107, %s1093, 64, 64, 4
        $region72: #{mhsa_forward.4} parent=43 // pred_fallthru
          _
      $region44: #{mhsa_forward.4} parent=5 // pred_fallthru
        _
      %p1115 = scmp.le.s32.totalorder 2, %s23
      // Predicated region
      $region73: #{mhsa_forward.4} parent=5 // pred_check
        %p1116 = pneg %p1115
      $region74: #{mhsa_forward.4} parent=5 // pred_check_branch
        %1118 = sbr.rel (%p1116) target = $region76
      $region75: #{mhsa_forward.4} parent=5 // pred_region
        %s1119 = ssub.s32 %s23, 2
        // Predicated region
        $region77: #{mhsa_forward.4} parent=75 // pred_check
          %p1120 = pneg %p214
        $region78: #{mhsa_forward.4} parent=75 // pred_check_branch
          %1122 = sbr.rel (%p1120) target = $region80
        $region79: #{mhsa_forward.4} parent=75 // pred_region
          %s1123 = sand.u32 %s199, 1
          %s1124 = scalar_lea.sflag [#allocation4], %s1123
          %s1125 = sand.u32 %s199, 1
          %s1126 = smul.addr %s1125, 8
          %s1127 = scalar_lea.vmem [#allocation13], %s1126
          %1128 = dma.done %s1124, 128
        $region80: #{mhsa_forward.4} parent=75 // pred_fallthru
          _
      $region76: #{mhsa_forward.4} parent=5 // pred_fallthru
        _
    $region6: #{mhsa_forward.4} parent=1 // loop_footer
      %s27 = sadd.s32 1, %s23
    $region7: #{mhsa_forward.4} parent=1 // loop_footer_branch
      %22 = sbr.rel target = $region3
    $region8: #{mhsa_forward.4} parent=1 // loop_exit
      _
    %1129 = vsyncpa [#allocation3], 1
    %s1130 = scalar_lea.sflag [#allocation3], 1
    %1131 = vsyncpa %s1130, 1
    %1132 = vsyncpa [#allocation6], 1
    %s1133 = scalar_lea.sflag [#allocation6], 1
    %1134 = vsyncpa %s1133, 1
    %1135 = vsyncpa [#allocation9], 1
    %1136 = vsyncpa [#allocation12], 1
    %1137 = vsyncpa [#allocation4], 1
    %s1138 = scalar_lea.sflag [#allocation4], 1
    %1139 = vsyncpa %s1138, 1

</llo_original>
